<compile_context>
chip_gen: v7x
topology: tpu7x:2x2x1
jax: 0.10.0
libtpu: 0.0.40
codegen_flags: <defaults>
</compile_context>

<pallas_src>
import math

import jax
import jax.numpy as jnp
from jax.experimental import pallas as pl
from jax.experimental.pallas import tpu as pltpu


def _make_kernel(rows, seq_len, n_embd, n_head, head_size, use_sigmoid):
    T = seq_len
    E = n_embd
    H = head_size

    def kernel(x_ref, wqkv_ref, wproj_ref, bias_ref, o_ref):
        x = x_ref[...]        # (rows, E), caller dtype (bf16 on the fast path)
        w = wqkv_ref[...]     # (E, 3E)

        # Fused QKV projection, f32 accumulation on the MXU.  The 1/sqrt(C) scale is
        # already folded into the q columns of w_qkv.
        qkv = jnp.dot(x, w, preferred_element_type=jnp.float32)       # (rows, 3E) f32
        # 128-lane-aligned slices (free address arithmetic).
        q_all = qkv[:, 0 * E:1 * E].astype(x.dtype)
        k_all = qkv[:, 1 * E:2 * E].astype(x.dtype)
        v_all = qkv[:, 2 * E:3 * E].astype(x.dtype)

        # Causal mask; block-diagonal across batches when B is folded into the rows.
        row = jax.lax.broadcasted_iota(jnp.int32, (rows, rows), 0)
        col = jax.lax.broadcasted_iota(jnp.int32, (rows, rows), 1)
        if rows == T:
            mask = row >= col
        else:
            mask = (row // T == col // T) & (row % T >= col % T)      # T is a power of 2

        outs = []
        for h in range(n_head):   # static loop; per-head (rows,H) sub-lane slices are tiny
            lo, hi = h * H, (h + 1) * H
            q = q_all[:, lo:hi]
            k = k_all[:, lo:hi]
            v = v_all[:, lo:hi]

            # scores = q @ k^T without materializing a transpose.
            s = jax.lax.dot_general(
                q, k, dimension_numbers=(((1,), (1,)), ((), ())),
                preferred_element_type=jnp.float32)                    # (rows, rows) f32

            if use_sigmoid:
                # Exact sigmoid via one EUP tanh; masked (future) positions -> 0,
                # matching torch sigmoid(-inf) == 0.
                p = jnp.where(mask, 0.5 * (jnp.tanh(0.5 * s) + 1.0), 0.0)
                out_h = jnp.dot(p.astype(x.dtype), v,
                                preferred_element_type=jnp.float32)    # (rows, H) f32
            else:
                s = jnp.where(mask, s, -jnp.inf)
                m = jnp.max(s, axis=-1, keepdims=True)
                p = jnp.exp(s - m)                                     # (rows, rows) f32
                acc = jnp.dot(p.astype(x.dtype), v,
                              preferred_element_type=jnp.float32)      # (rows, H) f32
                # Normalize after the matmul: EUP reciprocal on (rows,1), mul on (rows,H).
                out_h = acc * pl.reciprocal(
                    jnp.sum(p, axis=-1, keepdims=True), approx=True)

            outs.append(out_h.astype(x.dtype))

        cat = jnp.concatenate(outs, axis=-1)                           # (rows, E)
        proj = jnp.dot(cat, wproj_ref[...],
                       preferred_element_type=jnp.float32)             # (rows, E) f32
        o_ref[...] = (proj + bias_ref[...].astype(jnp.float32)).astype(o_ref.dtype)

    return kernel


def multi_head_attention(x, wq, wk, wv, w_proj, b_proj, *,
                         use_sigmoid=False, fold_batch=False):
    """Fused multi-head causal attention (nanoGPT MultiHeadAttention forward).

    x:            [B, T, E]
    wq, wk, wv:   [n_head, head_size, E]   (per-head nn.Linear weight layout, bias=False)
    w_proj:       [E, E]                   (nn.Linear weight)
    b_proj:       [E]                      (nn.Linear bias)
    fold_batch:   True  -> collapse B into the row dim, single grid step (v5e/v6e, 1 TC)
                  False -> grid=(B,) "parallel" (keeps both v7x TensorCores busy)
    """
    B, T, E = x.shape
    nH, H, _ = wq.shape
    assert nH * H == E, "n_head * head_size must equal n_embd"

    scale = float(E) ** -0.5   # matches `C ** (-0.5)` in the PyTorch forward

    # Fused, pre-transposed QKV weight (E, 3E): [Q_h0..Q_h3 | K_h0..K_h3 | V_h0..V_h3];
    # the attention scale is folded into the Q columns here (free: merges into the concat).
    q_cols = jnp.transpose(wq, (2, 0, 1)).reshape(E, E) * scale
    k_cols = jnp.transpose(wk, (2, 0, 1)).reshape(E, E)
    v_cols = jnp.transpose(wv, (2, 0, 1)).reshape(E, E)
    w_qkv = jnp.concatenate([q_cols, k_cols, v_cols], axis=1)          # (E, 3E)
    w_proj_t = w_proj.T                                                # (E, E)
    bias = b_proj.reshape(1, E)

    rows = B * T if fold_batch else T
    steps = 1 if fold_batch else B
    x2 = x.reshape(B * T, E)

    kernel = _make_kernel(rows, T, E, nH, H, use_sigmoid)

    # Advisory cost estimate for the whole call (QKV + scores + PV + proj).
    flops = (2 * B * T * E * 3 * E            # QKV projection
             + 2 * nH * B * T * T * 2 * H     # q@k^T and p@v per head
             + 2 * B * T * E * E)             # output projection
    transcendentals = nH * B * T * T          # exp / tanh over the score tiles
    itemsize = jnp.dtype(x.dtype).itemsize
    bytes_accessed = itemsize * (2 * B * T * E + 3 * E * E + E * E + E)

    out2 = pl.pallas_call(
        kernel,
        out_shape=jax.ShapeDtypeStruct((B * T, E), x.dtype),
        grid_spec=pltpu.PrefetchScalarGridSpec(
            num_scalar_prefetch=0,
            grid=(steps,),
            in_specs=[
                pl.BlockSpec((rows, E), lambda i: (i, 0)),        # x rows for this step
                pl.BlockSpec((E, 3 * E), lambda i: (0, 0)),       # fused W_qkv^T
                pl.BlockSpec((E, E), lambda i: (0, 0)),           # W_proj^T
                pl.BlockSpec((1, E), lambda i: (0, 0)),           # proj bias
            ],
            out_specs=pl.BlockSpec((rows, E), lambda i: (i, 0)),
        ),
        compiler_params=pltpu.CompilerParams(
            dimension_semantics=("parallel",),
        ),
        cost_estimate=pl.CostEstimate(
            flops=flops, transcendentals=transcendentals,
            bytes_accessed=bytes_accessed),
    )(x2, w_qkv, w_proj_t, bias)

    return out2.reshape(B, T, E)


def multi_head_attention_ref(x, wq, wk, wv, w_proj, b_proj, *, use_sigmoid=False):
    """Pure-JAX f32 reference mirroring the PyTorch MultiHeadAttention forward."""
    xf = x.astype(jnp.float32)
    B, T, C = x.shape
    nH = wq.shape[0]
    tril = jnp.tril(jnp.ones((T, T), dtype=bool))
    outs = []
    for h in range(nH):
        q = xf @ wq[h].astype(jnp.float32).T
        k = xf @ wk[h].astype(jnp.float32).T
        v = xf @ wv[h].astype(jnp.float32).T
        wei = jnp.einsum("btd,bsd->bts", q, k) * (float(C) ** -0.5)
        wei = jnp.where(tril, wei, -jnp.inf)
        if use_sigmoid:
            w = jax.nn.sigmoid(wei)              # sigmoid(-inf) = 0, matches masked_fill
        else:
            w = jax.nn.softmax(wei, axis=-1)
        outs.append(jnp.einsum("bts,bsd->btd", w, v))
    cat = jnp.concatenate(outs, axis=-1)
    return cat @ w_proj.astype(jnp.float32).T + b_proj.astype(jnp.float32)


if __name__ == "__main__":
    # Module constants from the spec: n_embd=128, block_size=64, n_head=4, dropout=0.
    n_embd, block_size, n_head = 128, 64, 4
    head_size = n_embd // n_head   # 32
    B = 2

    key = jax.random.PRNGKey(0)
    kx, kq, kk, kv, kp, kb = jax.random.split(key, 6)
    bound = 1.0 / math.sqrt(n_embd)   # nn.Linear default init bound (in_features=n_embd)

    x = jax.random.normal(kx, (B, block_size, n_embd), dtype=jnp.float32)
    wq = jax.random.uniform(kq, (n_head, head_size, n_embd), minval=-bound, maxval=bound,
                            dtype=jnp.float32)
    wk = jax.random.uniform(kk, (n_head, head_size, n_embd), minval=-bound, maxval=bound,
                            dtype=jnp.float32)
    wv = jax.random.uniform(kv, (n_head, head_size, n_embd), minval=-bound, maxval=bound,
                            dtype=jnp.float32)
    w_proj = jax.random.uniform(kp, (n_embd, n_embd), minval=-bound, maxval=bound,
                                dtype=jnp.float32)
    b_proj = jax.random.uniform(kb, (n_embd,), minval=-bound, maxval=bound,
                                dtype=jnp.float32)

    # 1) f32, softmax, grid over B (v7x-friendly 2-way parallel grid).
    out = jax.block_until_ready(
        multi_head_attention(x, wq, wk, wv, w_proj, b_proj))
    ref = multi_head_attention_ref(x, wq, wk, wv, w_proj, b_proj)
    assert out.shape == (B, block_size, n_embd)
    assert jnp.allclose(out, ref, atol=5e-3, rtol=5e-3), "f32 softmax mismatch"

    # 2) f32, softmax, batch folded into rows (single step: v5e/v6e single-TC path).
    out_f = jax.block_until_ready(
        multi_head_attention(x, wq, wk, wv, w_proj, b_proj, fold_batch=True))
    assert jnp.allclose(out_f, ref, atol=5e-3, rtol=5e-3), "f32 folded softmax mismatch"

    # 3) bf16 fast-MXU path (operands stay bf16, accumulation / softmax math in f32).
    xb, wqb, wkb, wvb, wpb, bpb = (a.astype(jnp.bfloat16)
                                   for a in (x, wq, wk, wv, w_proj, b_proj))
    outb = jax.block_until_ready(
        multi_head_attention(xb, wqb, wkb, wvb, wpb, bpb))
    refb = multi_head_attention_ref(xb, wqb, wkb, wvb, wpb, bpb)
    assert jnp.allclose(outb.astype(jnp.float32), refb, atol=3e-2, rtol=3e-2), \
        "bf16 softmax mismatch"

    # 4) sigmoid-attention variant (use_sigmoid=True), f32 — previously the failing case.
    outs = jax.block_until_ready(
        multi_head_attention(x, wq, wk, wv, w_proj, b_proj, use_sigmoid=True))
    refs = multi_head_attention_ref(x, wq, wk, wv, w_proj, b_proj, use_sigmoid=True)
    assert jnp.allclose(outs, refs, atol=5e-3, rtol=5e-3), "f32 sigmoid mismatch"

    # 5) bf16 sigmoid with the folded-batch layout.
    outs_b = jax.block_until_ready(
        multi_head_attention(xb, wqb, wkb, wvb, wpb, bpb,
                             use_sigmoid=True, fold_batch=True))
    refs_b = multi_head_attention_ref(xb, wqb, wkb, wvb, wpb, bpb, use_sigmoid=True)
    assert jnp.allclose(outs_b.astype(jnp.float32), refs_b, atol=3e-2, rtol=3e-2), \
        "bf16 sigmoid mismatch"

    print("KERNEL_OK")
</pallas_src>

<mosaic_0001>
module attributes {stable_mosaic.version = 11 : i64} {
  func.func @kernel(%arg0: i32, %arg1: memref<64x128xf32, #tpu.memory_space<vmem>>, %arg2: memref<128x384xf32, #tpu.memory_space<vmem>>, %arg3: memref<128x128xf32, #tpu.memory_space<vmem>>, %arg4: memref<1x128xf32, #tpu.memory_space<vmem>>, %arg5: memref<64x128xf32, #tpu.memory_space<vmem>>) attributes {dimension_semantics = [#tpu.dimension_semantics<parallel>], iteration_bounds = array<i64: 2>, scalar_prefetch = 0 : i64, scratch_operands = 0 : i64, tpu.core_type = #tpu.core_type<tc>, window_params = [{transform_indices = @transform_0, window_bounds = array<i64: 64, 128>}, {pipeline_mode = #tpu.pipeline_mode<synchronous>, transform_indices = @transform_1, window_bounds = array<i64: 128, 384>}, {pipeline_mode = #tpu.pipeline_mode<synchronous>, transform_indices = @transform_2, window_bounds = array<i64: 128, 128>}, {pipeline_mode = #tpu.pipeline_mode<synchronous>, transform_indices = @transform_3, window_bounds = array<i64: 1, 128>}, {transform_indices = @transform_4, window_bounds = array<i64: 64, 128>}]} {
    %c0 = arith.constant 0 : index
    %c0_0 = arith.constant 0 : index
    %0 = vector.load %arg1[%c0, %c0_0] : memref<64x128xf32, #tpu.memory_space<vmem>>, vector<64x128xf32>
    %c0_1 = arith.constant 0 : index
    %c0_2 = arith.constant 0 : index
    %1 = vector.load %arg2[%c0_1, %c0_2] : memref<128x384xf32, #tpu.memory_space<vmem>>, vector<128x384xf32>
    %cst = arith.constant dense<0.000000e+00> : vector<64x384xf32>
    %2 = tpu.matmul %0, %1, %cst {dimension_numbers = #tpu.dot_dimension_numbers<[1], [0], [0], [1], [0, 0, 1, 1], [], []>} : vector<64x128xf32>, vector<128x384xf32>, vector<64x384xf32> -> vector<64x384xf32>
    %3 = vector.extract_strided_slice %2 {offsets = [0, 0], sizes = [64, 128], strides = [1, 1]} : vector<64x384xf32> to vector<64x128xf32>
    %4 = vector.extract_strided_slice %2 {offsets = [0, 128], sizes = [64, 128], strides = [1, 1]} : vector<64x384xf32> to vector<64x128xf32>
    %5 = vector.extract_strided_slice %2 {offsets = [0, 256], sizes = [64, 128], strides = [1, 1]} : vector<64x384xf32> to vector<64x128xf32>
    %6 = tpu.iota {dimensions = array<i32: 0>} : vector<64x64xi32>
    %7 = tpu.iota {dimensions = array<i32: 1>} : vector<64x64xi32>
    %8 = arith.cmpi sge, %6, %7 : vector<64x64xi32>
    %9 = vector.extract_strided_slice %3 {offsets = [0, 0], sizes = [64, 32], strides = [1, 1]} : vector<64x128xf32> to vector<64x32xf32>
    %10 = vector.extract_strided_slice %4 {offsets = [0, 0], sizes = [64, 32], strides = [1, 1]} : vector<64x128xf32> to vector<64x32xf32>
    %11 = vector.extract_strided_slice %5 {offsets = [0, 0], sizes = [64, 32], strides = [1, 1]} : vector<64x128xf32> to vector<64x32xf32>
    %cst_3 = arith.constant dense<0.000000e+00> : vector<64x64xf32>
    %12 = tpu.matmul %9, %10, %cst_3 {dimension_numbers = #tpu.dot_dimension_numbers<[1], [1], [0], [0], [0, 0, 1, 0], [], []>} : vector<64x32xf32>, vector<64x32xf32>, vector<64x64xf32> -> vector<64x64xf32>
    %cst_4 = arith.constant 0xFF800000 : f32
    %13 = vector.broadcast %cst_4 : f32 to vector<64x64xf32>
    %14 = arith.select %8, %12, %13 : vector<64x64xi1>, vector<64x64xf32>
    %cst_5 = arith.constant dense<0xFF800000> : vector<64xf32>
    %15 = vector.multi_reduction <maximumf>, %14, %cst_5 [1] : vector<64x64xf32> to vector<64xf32>
    %16 = vector.shape_cast %15 : vector<64xf32> to vector<64x1xf32>
    %17 = vector.broadcast %16 : vector<64x1xf32> to vector<64x64xf32>
    %18 = arith.subf %14, %17 : vector<64x64xf32>
    %19 = math.exp %18 : vector<64x64xf32>
    %cst_6 = arith.constant dense<0.000000e+00> : vector<64x32xf32>
    %20 = tpu.matmul %19, %11, %cst_6 {dimension_numbers = #tpu.dot_dimension_numbers<[1], [0], [0], [1], [0, 0, 1, 1], [], []>} : vector<64x64xf32>, vector<64x32xf32>, vector<64x32xf32> -> vector<64x32xf32>
    %cst_7 = arith.constant dense<0.000000e+00> : vector<64xf32>
    %21 = vector.multi_reduction <add>, %19, %cst_7 [1] : vector<64x64xf32> to vector<64xf32>
    %22 = vector.shape_cast %21 : vector<64xf32> to vector<64x1xf32>
    %23 = tpu.reciprocal %22 {approx = true} : vector<64x1xf32> -> vector<64x1xf32>
    %24 = vector.broadcast %23 : vector<64x1xf32> to vector<64x32xf32>
    %25 = arith.mulf %20, %24 : vector<64x32xf32>
    %26 = vector.extract_strided_slice %3 {offsets = [0, 32], sizes = [64, 32], strides = [1, 1]} : vector<64x128xf32> to vector<64x32xf32>
    %27 = vector.extract_strided_slice %4 {offsets = [0, 32], sizes = [64, 32], strides = [1, 1]} : vector<64x128xf32> to vector<64x32xf32>
    %28 = vector.extract_strided_slice %5 {offsets = [0, 32], sizes = [64, 32], strides = [1, 1]} : vector<64x128xf32> to vector<64x32xf32>
    %cst_8 = arith.constant dense<0.000000e+00> : vector<64x64xf32>
    %29 = tpu.matmul %26, %27, %cst_8 {dimension_numbers = #tpu.dot_dimension_numbers<[1], [1], [0], [0], [0, 0, 1, 0], [], []>} : vector<64x32xf32>, vector<64x32xf32>, vector<64x64xf32> -> vector<64x64xf32>
    %cst_9 = arith.constant 0xFF800000 : f32
    %30 = vector.broadcast %cst_9 : f32 to vector<64x64xf32>
    %31 = arith.select %8, %29, %30 : vector<64x64xi1>, vector<64x64xf32>
    %cst_10 = arith.constant dense<0xFF800000> : vector<64xf32>
    %32 = vector.multi_reduction <maximumf>, %31, %cst_10 [1] : vector<64x64xf32> to vector<64xf32>
    %33 = vector.shape_cast %32 : vector<64xf32> to vector<64x1xf32>
    %34 = vector.broadcast %33 : vector<64x1xf32> to vector<64x64xf32>
    %35 = arith.subf %31, %34 : vector<64x64xf32>
    %36 = math.exp %35 : vector<64x64xf32>
    %cst_11 = arith.constant dense<0.000000e+00> : vector<64x32xf32>
    %37 = tpu.matmul %36, %28, %cst_11 {dimension_numbers = #tpu.dot_dimension_numbers<[1], [0], [0], [1], [0, 0, 1, 1], [], []>} : vector<64x64xf32>, vector<64x32xf32>, vector<64x32xf32> -> vector<64x32xf32>
    %cst_12 = arith.constant dense<0.000000e+00> : vector<64xf32>
    %38 = vector.multi_reduction <add>, %36, %cst_12 [1] : vector<64x64xf32> to vector<64xf32>
    %39 = vector.shape_cast %38 : vector<64xf32> to vector<64x1xf32>
    %40 = tpu.reciprocal %39 {approx = true} : vector<64x1xf32> -> vector<64x1xf32>
    %41 = vector.broadcast %40 : vector<64x1xf32> to vector<64x32xf32>
    %42 = arith.mulf %37, %41 : vector<64x32xf32>
    %43 = vector.extract_strided_slice %3 {offsets = [0, 64], sizes = [64, 32], strides = [1, 1]} : vector<64x128xf32> to vector<64x32xf32>
    %44 = vector.extract_strided_slice %4 {offsets = [0, 64], sizes = [64, 32], strides = [1, 1]} : vector<64x128xf32> to vector<64x32xf32>
    %45 = vector.extract_strided_slice %5 {offsets = [0, 64], sizes = [64, 32], strides = [1, 1]} : vector<64x128xf32> to vector<64x32xf32>
    %cst_13 = arith.constant dense<0.000000e+00> : vector<64x64xf32>
    %46 = tpu.matmul %43, %44, %cst_13 {dimension_numbers = #tpu.dot_dimension_numbers<[1], [1], [0], [0], [0, 0, 1, 0], [], []>} : vector<64x32xf32>, vector<64x32xf32>, vector<64x64xf32> -> vector<64x64xf32>
    %cst_14 = arith.constant 0xFF800000 : f32
    %47 = vector.broadcast %cst_14 : f32 to vector<64x64xf32>
    %48 = arith.select %8, %46, %47 : vector<64x64xi1>, vector<64x64xf32>
    %cst_15 = arith.constant dense<0xFF800000> : vector<64xf32>
    %49 = vector.multi_reduction <maximumf>, %48, %cst_15 [1] : vector<64x64xf32> to vector<64xf32>
    %50 = vector.shape_cast %49 : vector<64xf32> to vector<64x1xf32>
    %51 = vector.broadcast %50 : vector<64x1xf32> to vector<64x64xf32>
    %52 = arith.subf %48, %51 : vector<64x64xf32>
    %53 = math.exp %52 : vector<64x64xf32>
    %cst_16 = arith.constant dense<0.000000e+00> : vector<64x32xf32>
    %54 = tpu.matmul %53, %45, %cst_16 {dimension_numbers = #tpu.dot_dimension_numbers<[1], [0], [0], [1], [0, 0, 1, 1], [], []>} : vector<64x64xf32>, vector<64x32xf32>, vector<64x32xf32> -> vector<64x32xf32>
    %cst_17 = arith.constant dense<0.000000e+00> : vector<64xf32>
    %55 = vector.multi_reduction <add>, %53, %cst_17 [1] : vector<64x64xf32> to vector<64xf32>
    %56 = vector.shape_cast %55 : vector<64xf32> to vector<64x1xf32>
    %57 = tpu.reciprocal %56 {approx = true} : vector<64x1xf32> -> vector<64x1xf32>
    %58 = vector.broadcast %57 : vector<64x1xf32> to vector<64x32xf32>
    %59 = arith.mulf %54, %58 : vector<64x32xf32>
    %60 = vector.extract_strided_slice %3 {offsets = [0, 96], sizes = [64, 32], strides = [1, 1]} : vector<64x128xf32> to vector<64x32xf32>
    %61 = vector.extract_strided_slice %4 {offsets = [0, 96], sizes = [64, 32], strides = [1, 1]} : vector<64x128xf32> to vector<64x32xf32>
    %62 = vector.extract_strided_slice %5 {offsets = [0, 96], sizes = [64, 32], strides = [1, 1]} : vector<64x128xf32> to vector<64x32xf32>
    %cst_18 = arith.constant dense<0.000000e+00> : vector<64x64xf32>
    %63 = tpu.matmul %60, %61, %cst_18 {dimension_numbers = #tpu.dot_dimension_numbers<[1], [1], [0], [0], [0, 0, 1, 0], [], []>} : vector<64x32xf32>, vector<64x32xf32>, vector<64x64xf32> -> vector<64x64xf32>
    %cst_19 = arith.constant 0xFF800000 : f32
    %64 = vector.broadcast %cst_19 : f32 to vector<64x64xf32>
    %65 = arith.select %8, %63, %64 : vector<64x64xi1>, vector<64x64xf32>
    %cst_20 = arith.constant dense<0xFF800000> : vector<64xf32>
    %66 = vector.multi_reduction <maximumf>, %65, %cst_20 [1] : vector<64x64xf32> to vector<64xf32>
    %67 = vector.shape_cast %66 : vector<64xf32> to vector<64x1xf32>
    %68 = vector.broadcast %67 : vector<64x1xf32> to vector<64x64xf32>
    %69 = arith.subf %65, %68 : vector<64x64xf32>
    %70 = math.exp %69 : vector<64x64xf32>
    %cst_21 = arith.constant dense<0.000000e+00> : vector<64x32xf32>
    %71 = tpu.matmul %70, %62, %cst_21 {dimension_numbers = #tpu.dot_dimension_numbers<[1], [0], [0], [1], [0, 0, 1, 1], [], []>} : vector<64x64xf32>, vector<64x32xf32>, vector<64x32xf32> -> vector<64x32xf32>
    %cst_22 = arith.constant dense<0.000000e+00> : vector<64xf32>
    %72 = vector.multi_reduction <add>, %70, %cst_22 [1] : vector<64x64xf32> to vector<64xf32>
    %73 = vector.shape_cast %72 : vector<64xf32> to vector<64x1xf32>
    %74 = tpu.reciprocal %73 {approx = true} : vector<64x1xf32> -> vector<64x1xf32>
    %75 = vector.broadcast %74 : vector<64x1xf32> to vector<64x32xf32>
    %76 = arith.mulf %71, %75 : vector<64x32xf32>
    %77 = tpu.concatenate %25, %42, %59, %76 in 1 : vector<64x32xf32>, vector<64x32xf32>, vector<64x32xf32>, vector<64x32xf32> -> vector<64x128xf32>
    %c0_23 = arith.constant 0 : index
    %c0_24 = arith.constant 0 : index
    %78 = vector.load %arg3[%c0_23, %c0_24] : memref<128x128xf32, #tpu.memory_space<vmem>>, vector<128x128xf32>
    %cst_25 = arith.constant dense<0.000000e+00> : vector<64x128xf32>
    %79 = tpu.matmul %77, %78, %cst_25 {dimension_numbers = #tpu.dot_dimension_numbers<[1], [0], [0], [1], [0, 0, 1, 1], [], []>} : vector<64x128xf32>, vector<128x128xf32>, vector<64x128xf32> -> vector<64x128xf32>
    %c0_26 = arith.constant 0 : index
    %c0_27 = arith.constant 0 : index
    %80 = vector.load %arg4[%c0_26, %c0_27] : memref<1x128xf32, #tpu.memory_space<vmem>>, vector<1x128xf32>
    %81 = vector.broadcast %80 : vector<1x128xf32> to vector<64x128xf32>
    %82 = arith.addf %79, %81 : vector<64x128xf32>
    %c0_28 = arith.constant 0 : index
    %c0_29 = arith.constant 0 : index
    %83 = vector.load %arg5[%c0_28, %c0_29] : memref<64x128xf32, #tpu.memory_space<vmem>>, vector<64x128xf32>
    tpu.vector_store %arg5[%c0_28, %c0_29], %82 {strides = array<i32>} : memref<64x128xf32, #tpu.memory_space<vmem>>, vector<64x128xf32>,
    return
  }
  func.func @transform_0(%arg0: i32) -> (i32, i32) {
    %c0_i32 = arith.constant 0 : i32
    %c0_i32_0 = arith.constant 0 : i32
    return %arg0, %c0_i32 : i32, i32
  }
  func.func @transform_1(%arg0: i32) -> (i32, i32) {
    %c0_i32 = arith.constant 0 : i32
    %c0_i32_0 = arith.constant 0 : i32
    %c0_i32_1 = arith.constant 0 : i32
    return %c0_i32, %c0_i32_0 : i32, i32
  }
  func.func @transform_2(%arg0: i32) -> (i32, i32) {
    %c0_i32 = arith.constant 0 : i32
    %c0_i32_0 = arith.constant 0 : i32
    %c0_i32_1 = arith.constant 0 : i32
    return %c0_i32, %c0_i32_0 : i32, i32
  }
  func.func @transform_3(%arg0: i32) -> (i32, i32) {
    %c0_i32 = arith.constant 0 : i32
    %c0_i32_0 = arith.constant 0 : i32
    %c0_i32_1 = arith.constant 0 : i32
    return %c0_i32, %c0_i32_0 : i32, i32
  }
  func.func @transform_4(%arg0: i32) -> (i32, i32) {
    %c0_i32 = arith.constant 0 : i32
    %c0_i32_0 = arith.constant 0 : i32
    return %arg0, %c0_i32 : i32, i32
  }
}

</mosaic_0001>

<llo_original>
// kernel: tpu_custom_call.1
$region0: #{tpu_custom_call.1}
  #allocation0 [shape = 'u32[]', space=smem, size = 0x4, offset = 0x4, fixed_abs, tag = 'smem constant byte address 0x4 - core index']
  #allocation1 [shape = 'u32[144,128]{1,0:T(1,128)}', space=vmem, size = 0x12000, scoped, tag = 'internal scratch']
  %s0 = inlined_call_operand.hbm [shape: f32[128,128], index: 0, kind: input, shape index: {}]
  %s1 = inlined_call_operand.hbm [shape: f32[128,384], index: 1, kind: input, shape index: {}]
  %s2 = inlined_call_operand.hbm [shape: f32[128,128], index: 2, kind: input, shape index: {}]
  %s3 = inlined_call_operand.vmem [shape: f32[1,128], index: 3, kind: input, shape index: {}]
  %s4 = inlined_call_operand.hbm [shape: f32[128,128], index: 4, kind: output, shape index: {}]
  %s5 = sld [smem:[#allocation0]]
  $region61: #{tpu_custom_call.1} parent=0
    _
  %s7 = ssub.s32 1, %s5
  %s8 = scalar_select 0, %s7, %s5
  $region1: #{tpu_custom_call.1} parent=0
    #allocation2 [shape = 'u8[65536]{0}', space=vmem, size = 0x10000, scoped, tag = 'input window, operand 0']
    #allocation3 [shape = 's32[2]{0}', space=sflag, size = 0x8, scoped, tag = 'scoped memory for tpu_custom_call.1']
    #allocation4 [shape = 's32[2]{0}', space=sflag, size = 0x8, scoped, tag = 'scoped memory for tpu_custom_call.1']
    #allocation5 [shape = 'u8[196608]{0}', space=vmem, size = 0x30000, scoped, tag = 'input window, operand 1, single buffered']
    #allocation6 [shape = 's32[1]{0}', space=sflag, size = 0x4, scoped, tag = 'scoped memory for tpu_custom_call.1']
    #allocation7 [shape = 'u8[65536]{0}', space=vmem, size = 0x10000, scoped, tag = 'input window, operand 2, single buffered']
    #allocation8 [shape = 'u8[65536]{0}', space=vmem, size = 0x10000, scoped, tag = 'output window, operand 0']
    %9 = vsyncpa [#allocation3], 0
    %s10 = scalar_lea.sflag [#allocation3], 1
    %11 = vsyncpa %s10, 0
    %12 = vsyncpa [#allocation6], 0
    %13 = vsyncpa [#allocation4], 0
    %s14 = scalar_lea.sflag [#allocation4], 1
    %15 = vsyncpa %s14, 0
    loop: start=0, step=1, limit=4
    $region2: #{tpu_custom_call.1} parent=1 // loop_pre_header
      _
    $region3: #{tpu_custom_call.1} parent=1 // loop_header
      %s17 = sphi 0, %s21
      %p18 = scmp.ge.s32.totalorder %s17, 4
      %s27 = sphi 0, %s29
      %s30 = sphi 0, %s27
      %s31 = sphi 0, %s30
      %s47 = sphi 0, %s31
      %s51 = sphi 0, %s51
      %s53 = sphi 0, %s51
      %s54 = sphi 0, %s53
      %s68 = sphi 0, %s54
      %s72 = sphi 0, %s72
      %s74 = sphi 0, %s72
      %s75 = sphi 0, %s74
      %s89 = sphi 0, %s75
      %s93 = sphi 0, %s93
      %s95 = sphi 0, %s93
      %s96 = sphi 0, %s95
      %s110 = sphi 0, %s96
      %s116 = sphi 0, %s118
      %s119 = sphi 0, %s116
      %s120 = sphi 0, %s119
      %s136 = sphi 0, %s120
    $region4: #{tpu_custom_call.1} parent=1 // loop_header_branch
      %20 = sbr.rel (%p18) target = $region8
    $region5: #{tpu_custom_call.1} parent=1 // loop_body
      %s22 = ssub.s32 %s17, 1
      %s23 = ssub.s32 %s17, 2
      %s24 = sadd.s32 %s17, 1
      %s25 = ssub.s32 %s17, %s24
      %p26 = scmp.eq.s32.totalorder %s25, 0
      %s28 = sadd.s32 %s27, 1
      %s29 = scalar_select %p26, %s27, %s28
      %p32 = pneg %p26
      %p33 = scmp.eq.s32.totalorder %s17, 1
      %p34 = por %p32, %p33
      %p35 = scmp.ne.s32.totalorder %s27, %s30
      %p36 = scmp.eq.s32.totalorder %s17, 0
      %p37 = por %p35, %p36
      %p38 = scmp.ne.s32.totalorder %s27, %s30
      %p39 = scmp.eq.s32.totalorder %s22, 1
      %p40 = por %p38, %p39
      %p41 = scmp.ne.s32.totalorder %s30, %s31
      %p42 = scmp.eq.s32.totalorder %s22, 0
      %p43 = por %p41, %p42
      %p44 = scmp.ne.s32.totalorder %s30, %s31
      %p45 = scmp.eq.s32.totalorder %s23, 1
      %p46 = por %p44, %p45
      %p48 = scmp.ne.s32.totalorder %s31, %s47
      %p49 = scmp.eq.s32.totalorder %s23, 0
      %p50 = por %p48, %p49
      %s52 = sadd.s32 %s51, 1
      %p55 = scmp.eq.s32.totalorder %s17, 1
      %p56 = scmp.ne.s32.totalorder %s51, %s53
      %p57 = scmp.eq.s32.totalorder %s17, 0
      %p58 = por %p56, %p57
      %p59 = scmp.ne.s32.totalorder %s51, %s53
      %p60 = scmp.eq.s32.totalorder %s22, 1
      %p61 = por %p59, %p60
      %p62 = scmp.ne.s32.totalorder %s53, %s54
      %p63 = scmp.eq.s32.totalorder %s22, 0
      %p64 = por %p62, %p63
      %p65 = scmp.ne.s32.totalorder %s53, %s54
      %p66 = scmp.eq.s32.totalorder %s23, 1
      %p67 = por %p65, %p66
      %p69 = scmp.ne.s32.totalorder %s54, %s68
      %p70 = scmp.eq.s32.totalorder %s23, 0
      %p71 = por %p69, %p70
      %s73 = sadd.s32 %s72, 1
      %p76 = scmp.eq.s32.totalorder %s17, 1
      %p77 = scmp.ne.s32.totalorder %s72, %s74
      %p78 = scmp.eq.s32.totalorder %s17, 0
      %p79 = por %p77, %p78
      %p80 = scmp.ne.s32.totalorder %s72, %s74
      %p81 = scmp.eq.s32.totalorder %s22, 1
      %p82 = por %p80, %p81
      %p83 = scmp.ne.s32.totalorder %s74, %s75
      %p84 = scmp.eq.s32.totalorder %s22, 0
      %p85 = por %p83, %p84
      %p86 = scmp.ne.s32.totalorder %s74, %s75
      %p87 = scmp.eq.s32.totalorder %s23, 1
      %p88 = por %p86, %p87
      %p90 = scmp.ne.s32.totalorder %s75, %s89
      %p91 = scmp.eq.s32.totalorder %s23, 0
      %p92 = por %p90, %p91
      %s94 = sadd.s32 %s93, 1
      %p97 = scmp.eq.s32.totalorder %s17, 1
      %p98 = scmp.ne.s32.totalorder %s93, %s95
      %p99 = scmp.eq.s32.totalorder %s17, 0
      %p100 = por %p98, %p99
      %p101 = scmp.ne.s32.totalorder %s93, %s95
      %p102 = scmp.eq.s32.totalorder %s22, 1
      %p103 = por %p101, %p102
      %p104 = scmp.ne.s32.totalorder %s95, %s96
      %p105 = scmp.eq.s32.totalorder %s22, 0
      %p106 = por %p104, %p105
      %p107 = scmp.ne.s32.totalorder %s95, %s96
      %p108 = scmp.eq.s32.totalorder %s23, 1
      %p109 = por %p107, %p108
      %p111 = scmp.ne.s32.totalorder %s96, %s110
      %p112 = scmp.eq.s32.totalorder %s23, 0
      %p113 = por %p111, %p112
      %s114 = ssub.s32 %s17, %s24
      %p115 = scmp.eq.s32.totalorder %s114, 0
      %s117 = sadd.s32 %s116, 1
      %s118 = scalar_select %p115, %s116, %s117
      %p121 = pneg %p115
      %p122 = scmp.eq.s32.totalorder %s17, 1
      %p123 = por %p121, %p122
      %p124 = scmp.ne.s32.totalorder %s116, %s119
      %p125 = scmp.eq.s32.totalorder %s17, 0
      %p126 = por %p124, %p125
      %p127 = scmp.ne.s32.totalorder %s116, %s119
      %p128 = scmp.eq.s32.totalorder %s22, 1
      %p129 = por %p127, %p128
      %p130 = scmp.ne.s32.totalorder %s119, %s120
      %p131 = scmp.eq.s32.totalorder %s22, 0
      %p132 = por %p130, %p131
      %p133 = scmp.ne.s32.totalorder %s119, %s120
      %p134 = scmp.eq.s32.totalorder %s23, 1
      %p135 = por %p133, %p134
      %p137 = scmp.ne.s32.totalorder %s120, %s136
      %p138 = scmp.eq.s32.totalorder %s23, 0
      %p139 = por %p137, %p138
      %p140 = scmp.le.s32.totalorder 1, %s17
      %p141 = scmp.lt.s32.totalorder %s17, 3
      %p142 = pnand %p140, %p141
      %p143 = pneg %p142
      // Predicated region
      $region9: #{tpu_custom_call.1} parent=5 // pred_check
        _
      $region10: #{tpu_custom_call.1} parent=5 // pred_check_branch
        %145 = sbr.rel (%p142) target = $region12
      $region11: #{tpu_custom_call.1} parent=5 // pred_region
        %s146 = ssub.s32 %s17, 1
        // Predicated region
        $region13: #{tpu_custom_call.1} parent=11 // pred_check
          %p147 = pneg %p64
        $region14: #{tpu_custom_call.1} parent=11 // pred_check_branch
          %149 = sbr.rel (%p147) target = $region16
        $region15: #{tpu_custom_call.1} parent=11 // pred_region
          %s151 = ssub.s32 6144, 6144
          %152 = vsyncadd [#allocation6], %s151
          %s153 = sshll.u32 [#allocation5], 4
          %s154 = int_to_ptr.vmem [resolvable:$true] %s153
          %159 = dma.hbm_to_vmem [thread:$0]  %s1, 6144, %s154, [#allocation6], 384, 384, 24
        $region16: #{tpu_custom_call.1} parent=11 // pred_fallthru
          _
        // Predicated region
        $region17: #{tpu_custom_call.1} parent=11 // pred_check
          %p160 = pneg %p85
        $region18: #{tpu_custom_call.1} parent=11 // pred_check_branch
          %162 = sbr.rel (%p160) target = $region20
        $region19: #{tpu_custom_call.1} parent=11 // pred_region
          %s164 = ssub.s32 2048, 2048
          %165 = vsyncadd [#allocation6], %s164
          %s166 = sshll.u32 [#allocation7], 4
          %s167 = int_to_ptr.vmem [resolvable:$true] %s166
          %172 = dma.hbm_to_vmem [thread:$0]  %s2, 2048, %s167, [#allocation6], 128, 128, 8
        $region20: #{tpu_custom_call.1} parent=11 // pred_fallthru
          _
        // Predicated region
        $region21: #{tpu_custom_call.1} parent=11 // pred_check
          %p173 = pneg %p106
        $region22: #{tpu_custom_call.1} parent=11 // pred_check_branch
          %175 = sbr.rel (%p173) target = $region24
        $region23: #{tpu_custom_call.1} parent=11 // pred_region
          _
        $region24: #{tpu_custom_call.1} parent=11 // pred_fallthru
          _
      $region12: #{tpu_custom_call.1} parent=5 // pred_fallthru
        _
      %p176 = scmp.lt.s32.totalorder %s17, 2
      // Predicated region
      $region25: #{tpu_custom_call.1} parent=5 // pred_check
        %p177 = pneg %p176
      $region26: #{tpu_custom_call.1} parent=5 // pred_check_branch
        %179 = sbr.rel (%p177) target = $region28
      $region27: #{tpu_custom_call.1} parent=5 // pred_region
        // Predicated region
        $region29: #{tpu_custom_call.1} parent=27 // pred_check
          %p180 = pneg %p37
        $region30: #{tpu_custom_call.1} parent=27 // pred_check_branch
          %182 = sbr.rel (%p180) target = $region32
        $region31: #{tpu_custom_call.1} parent=27 // pred_region
          %s183 = sand.u32 %s27, 1
          %s184 = scalar_lea.sflag [#allocation3], %s183
          %s185 = sand.u32 %s27, 1
          %s186 = smul.addr %s185, 64
          %s187 = scalar_lea.vmem [#allocation2], %s186
          %s188 = smul.u32 8, %s17
          %s190 = ssub.s32 1024, 1024
          %191 = vsyncadd %s184, %s190
          %s192 = smul.addr %s188, 128
          %s193 = scalar_lea.hbm %s0, %s192
          %s194 = sshll.u32 %s187, 4
          %s195 = int_to_ptr.vmem [resolvable:$true] %s194
          %200 = dma.hbm_to_vmem [thread:$0]  %s193, 1024, %s195, %s184, 128, 128, 8
        $region32: #{tpu_custom_call.1} parent=27 // pred_fallthru
          _
      $region28: #{tpu_custom_call.1} parent=5 // pred_fallthru
        _
      %p201 = scmp.le.s32.totalorder 1, %s17
      %p202 = scmp.lt.s32.totalorder %s17, 3
      %p203 = pnand %p201, %p202
      %p204 = pneg %p203
      // Predicated region
      $region33: #{tpu_custom_call.1} parent=5 // pred_check
        _
      $region34: #{tpu_custom_call.1} parent=5 // pred_check_branch
        %206 = sbr.rel (%p203) target = $region36
      $region35: #{tpu_custom_call.1} parent=5 // pred_region
        %s207 = ssub.s32 %s17, 1
        %s208 = sand.u32 %s30, 1
        %s209 = scalar_lea.sflag [#allocation3], %s208
        %s210 = sand.u32 %s30, 1
        %s211 = smul.addr %s210, 64
        %s212 = scalar_lea.vmem [#allocation2], %s211
        // Predicated region
        $region37: #{tpu_custom_call.1} parent=35 // pred_check
          %p213 = pneg %p43
        $region38: #{tpu_custom_call.1} parent=35 // pred_check_branch
          %215 = sbr.rel (%p213) target = $region40
        $region39: #{tpu_custom_call.1} parent=35 // pred_region
          %216 = dma.done %s209, 1024
        $region40: #{tpu_custom_call.1} parent=35 // pred_fallthru
          _
        // Predicated region
        $region41: #{tpu_custom_call.1} parent=35 // pred_check
          %p217 = pneg %p64
        $region42: #{tpu_custom_call.1} parent=35 // pred_check_branch
          %219 = sbr.rel (%p217) target = $region44
        $region43: #{tpu_custom_call.1} parent=35 // pred_region
          %220 = dma.done [#allocation6], 6144
        $region44: #{tpu_custom_call.1} parent=35 // pred_fallthru
          _
        // Predicated region
        $region45: #{tpu_custom_call.1} parent=35 // pred_check
          %p221 = pneg %p85
        $region46: #{tpu_custom_call.1} parent=35 // pred_check_branch
          %223 = sbr.rel (%p221) target = $region48
        $region47: #{tpu_custom_call.1} parent=35 // pred_region
          %224 = dma.done [#allocation6], 2048
        $region48: #{tpu_custom_call.1} parent=35 // pred_fallthru
          _
        %s225 = sand.u32 %s30, 1
        %s226 = scalar_lea.sflag [#allocation3], %s225
        %s227 = sand.u32 %s30, 1
        %s228 = smul.addr %s227, 64
        %s229 = scalar_lea.vmem [#allocation2], %s228
        %p230 = pneg %p43
        %p231 = pneg %p40
        %p232 = pneg %p64
        %p233 = pneg %p61
        %p234 = pneg %p85
        %p235 = pneg %p82
        %p236 = pneg %p106
        %p237 = pneg %p103
        %p238 = pneg %p132
        %p239 = pneg %p129
        %s240 = sand.u32 %s119, 1
        %s241 = scalar_lea.sflag [#allocation4], %s240
        %s242 = sand.u32 %s119, 1
        %s243 = smul.addr %s242, 64
        %s244 = scalar_lea.vmem [#allocation8], %s243
        %s245 = smul.u32 8, %s22
        %s246 = smul.u32 8, %s22
        %v247 = vld [vmem:[%s212] sm:$0xff]
        %v248 = vld [vmem:[%s212 + $0x8] sm:$0xff]
        %v249 = vld [vmem:[%s212 + $0x10] sm:$0xff]
        %v250 = vld [vmem:[%s212 + $0x18] sm:$0xff]
        %v251 = vld [vmem:[%s212 + $0x20] sm:$0xff]
        %v252 = vld [vmem:[%s212 + $0x28] sm:$0xff]
        %v253 = vld [vmem:[%s212 + $0x30] sm:$0xff]
        %v254 = vld [vmem:[%s212 + $0x38] sm:$0xff]
        %v255 = vld [vmem:[#allocation5] sm:$0xff]
        %v256 = vld [vmem:[#allocation5 + $0x8] sm:$0xff]
        %v257 = vld [vmem:[#allocation5 + $0x10] sm:$0xff]
        %v258 = vld [vmem:[#allocation5 + $0x18] sm:$0xff]
        %v259 = vld [vmem:[#allocation5 + $0x20] sm:$0xff]
        %v260 = vld [vmem:[#allocation5 + $0x28] sm:$0xff]
        %v261 = vld [vmem:[#allocation5 + $0x30] sm:$0xff]
        %v262 = vld [vmem:[#allocation5 + $0x38] sm:$0xff]
        %v263 = vld [vmem:[#allocation5 + $0x40] sm:$0xff]
        %v264 = vld [vmem:[#allocation5 + $0x48] sm:$0xff]
        %v265 = vld [vmem:[#allocation5 + $0x50] sm:$0xff]
        %v266 = vld [vmem:[#allocation5 + $0x58] sm:$0xff]
        %v267 = vld [vmem:[#allocation5 + $0x60] sm:$0xff]
        %v268 = vld [vmem:[#allocation5 + $0x68] sm:$0xff]
        %v269 = vld [vmem:[#allocation5 + $0x70] sm:$0xff]
        %v270 = vld [vmem:[#allocation5 + $0x78] sm:$0xff]
        %v271 = vld [vmem:[#allocation5 + $0x80] sm:$0xff]
        %v272 = vld [vmem:[#allocation5 + $0x88] sm:$0xff]
        %v273 = vld [vmem:[#allocation5 + $0x90] sm:$0xff]
        %v274 = vld [vmem:[#allocation5 + $0x98] sm:$0xff]
        %v275 = vld [vmem:[#allocation5 + $0xa0] sm:$0xff]
        %v276 = vld [vmem:[#allocation5 + $0xa8] sm:$0xff]
        %v277 = vld [vmem:[#allocation5 + $0xb0] sm:$0xff]
        %v278 = vld [vmem:[#allocation5 + $0xb8] sm:$0xff]
        %v279 = vld [vmem:[#allocation5 + $0xc0] sm:$0xff]
        %v280 = vld [vmem:[#allocation5 + $0xc8] sm:$0xff]
        %v281 = vld [vmem:[#allocation5 + $0xd0] sm:$0xff]
        %v282 = vld [vmem:[#allocation5 + $0xd8] sm:$0xff]
        %v283 = vld [vmem:[#allocation5 + $0xe0] sm:$0xff]
        %v284 = vld [vmem:[#allocation5 + $0xe8] sm:$0xff]
        %v285 = vld [vmem:[#allocation5 + $0xf0] sm:$0xff]
        %v286 = vld [vmem:[#allocation5 + $0xf8] sm:$0xff]
        %v287 = vld [vmem:[#allocation5 + $0x100] sm:$0xff]
        %v288 = vld [vmem:[#allocation5 + $0x108] sm:$0xff]
        %v289 = vld [vmem:[#allocation5 + $0x110] sm:$0xff]
        %v290 = vld [vmem:[#allocation5 + $0x118] sm:$0xff]
        %v291 = vld [vmem:[#allocation5 + $0x120] sm:$0xff]
        %v292 = vld [vmem:[#allocation5 + $0x128] sm:$0xff]
        %v293 = vld [vmem:[#allocation5 + $0x130] sm:$0xff]
        %v294 = vld [vmem:[#allocation5 + $0x138] sm:$0xff]
        %v295 = vld [vmem:[#allocation5 + $0x140] sm:$0xff]
        %v296 = vld [vmem:[#allocation5 + $0x148] sm:$0xff]
        %v297 = vld [vmem:[#allocation5 + $0x150] sm:$0xff]
        %v298 = vld [vmem:[#allocation5 + $0x158] sm:$0xff]
        %v299 = vld [vmem:[#allocation5 + $0x160] sm:$0xff]
        %v300 = vld [vmem:[#allocation5 + $0x168] sm:$0xff]
        %v301 = vld [vmem:[#allocation5 + $0x170] sm:$0xff]
        %v302 = vld [vmem:[#allocation5 + $0x178] sm:$0xff]
        %303 = vmatprep.subr.mxu0 %v256
        %304 = vmatpush1.msra.mxu0 %v255
        %305 = vmatprep.subr.mxu0 %v259
        %306 = vmatpush1.msra.mxu0 %v258
        %307 = vmatprep.subr.mxu0 %v262
        %308 = vmatpush1.msra.mxu0 %v261
        %309 = vmatprep.subr.mxu0 %v265
        %310 = vmatpush1.msra.mxu0 %v264
        %311 = vmatprep.subr.mxu0 %v268
        %312 = vmatpush1.msra.mxu0 %v267
        %313 = vmatprep.subr.mxu0 %v271
        %314 = vmatpush1.msra.mxu0 %v270
        %315 = vmatprep.subr.mxu0 %v274
        %316 = vmatpush1.msra.mxu0 %v273
        %317 = vmatprep.subr.mxu0 %v277
        %318 = vmatpush1.msra.mxu0 %v276
        %319 = vmatprep.subr.mxu0 %v280
        %320 = vmatpush1.msra.mxu0 %v279
        %321 = vmatprep.subr.mxu0 %v283
        %322 = vmatpush1.msra.mxu0 %v282
        %323 = vmatprep.subr.mxu0 %v286
        %324 = vmatpush1.msra.mxu0 %v285
        %325 = vmatprep.subr.mxu0 %v289
        %326 = vmatpush1.msra.mxu0 %v288
        %327 = vmatprep.subr.mxu0 %v292
        %328 = vmatpush1.msra.mxu0 %v291
        %329 = vmatprep.subr.mxu0 %v295
        %330 = vmatpush1.msra.mxu0 %v294
        %331 = vmatprep.subr.mxu0 %v298
        %332 = vmatpush1.msra.mxu0 %v297
        %333 = vmatprep.subr.mxu0 %v301
        %334 = vmatpush1.msra.mxu0 %v300
        %335 = vmatprep.subr.mxu0 0.0
        %336 = vmatpush1.msra.mxu0 0.0
        %337 = vmatprep.subr.mxu0 0.0
        %338 = vmatpush1.msra.mxu0 0.0
        %339 = vmatprep.subr.mxu0 0.0
        %340 = vmatpush1.msra.mxu0 0.0
        %341 = vmatprep.subr.mxu0 0.0
        %342 = vmatpush1.msra.mxu0 0.0
        %343 = vmatprep.subr.mxu0 0.0
        %344 = vmatpush1.msra.mxu0 0.0
        %345 = vmatprep.subr.mxu0 0.0
        %346 = vmatpush1.msra.mxu0 0.0
        %347 = vmatprep.subr.mxu0 0.0
        %348 = vmatpush1.msra.mxu0 0.0
        %349 = vmatprep.subr.mxu0 0.0
        %350 = vmatpush1.msra.mxu0 0.0
        %351 = vmatprep.subr.mxu0 0.0
        %352 = vmatpush1.msra.mxu0 0.0
        %353 = vmatprep.subr.mxu0 0.0
        %354 = vmatpush1.msra.mxu0 0.0
        %355 = vmatprep.subr.mxu0 0.0
        %356 = vmatpush1.msra.mxu0 0.0
        %357 = vmatprep.subr.mxu0 0.0
        %358 = vmatpush1.msra.mxu0 0.0
        %359 = vmatprep.subr.mxu0 0.0
        %360 = vmatpush1.msra.mxu0 0.0
        %361 = vmatprep.subr.mxu0 0.0
        %362 = vmatpush1.msra.mxu0 0.0
        %363 = vmatprep.subr.mxu0 0.0
        %364 = vmatpush1.msra.mxu0 0.0
        %365 = vmatprep.subr.mxu0 0.0
        %366 = vmatpush1.msra.mxu0 0.0
        %367 = vmatprep.mubr.f32.mxu0 0.0
        %368 = vmatmul.mubr.f32.gmra.mrb[0].mxu0 %v247
        %v369 = vpop.f32.mrb[0].mxu0
        %v370 = vadd.f32 0.0, %v369
        %v371 = vpop.f32.mrb[0].mxu0
        %v372 = vadd.f32 0.0, %v371
        %373 = vmatprep.mubr.f32.mxu0 0.0
        %374 = vmatmul.mubr.f32.gmra.mrb[0].mxu0 %v248
        %v375 = vpop.f32.mrb[0].mxu0
        %v376 = vadd.f32 0.0, %v375
        %v377 = vpop.f32.mrb[0].mxu0
        %v378 = vadd.f32 0.0, %v377
        %379 = vmatprep.mubr.f32.mxu0 0.0
        %380 = vmatmul.mubr.f32.gmra.mrb[0].mxu0 %v249
        %v381 = vpop.f32.mrb[0].mxu0
        %v382 = vadd.f32 0.0, %v381
        %v383 = vpop.f32.mrb[0].mxu0
        %v384 = vadd.f32 0.0, %v383
        %385 = vmatprep.mubr.f32.mxu0 0.0
        %386 = vmatmul.mubr.f32.gmra.mrb[0].mxu0 %v250
        %v387 = vpop.f32.mrb[0].mxu0
        %v388 = vadd.f32 0.0, %v387
        %v389 = vpop.f32.mrb[0].mxu0
        %v390 = vadd.f32 0.0, %v389
        %391 = vmatprep.mubr.f32.mxu0 0.0
        %392 = vmatmul.mubr.f32.gmra.mrb[0].mxu0 %v251
        %v393 = vpop.f32.mrb[0].mxu0
        %v394 = vadd.f32 0.0, %v393
        %v395 = vpop.f32.mrb[0].mxu0
        %v396 = vadd.f32 0.0, %v395
        %397 = vmatprep.mubr.f32.mxu0 0.0
        %398 = vmatmul.mubr.f32.gmra.mrb[0].mxu0 %v252
        %v399 = vpop.f32.mrb[0].mxu0
        %v400 = vadd.f32 0.0, %v399
        %v401 = vpop.f32.mrb[0].mxu0
        %v402 = vadd.f32 0.0, %v401
        %403 = vmatprep.mubr.f32.mxu0 0.0
        %404 = vmatmul.mubr.f32.gmra.mrb[0].mxu0 %v253
        %v405 = vpop.f32.mrb[0].mxu0
        %v406 = vadd.f32 0.0, %v405
        %v407 = vpop.f32.mrb[0].mxu0
        %v408 = vadd.f32 0.0, %v407
        %409 = vmatprep.mubr.f32.mxu0 0.0
        %410 = vmatmul.mubr.f32.gmra.mrb[0].mxu0 %v254
        %v411 = vpop.f32.mrb[0].mxu0
        %v412 = vadd.f32 0.0, %v411
        %v413 = vpop.f32.mrb[0].mxu0
        %v414 = vadd.f32 0.0, %v413
        %415 = vdwg.mxu0
        %416 = vmatprep.subr.mxu0 0.0
        %417 = vmatpush1.msra.mxu0 %v257
        %418 = vmatprep.subr.mxu0 0.0
        %419 = vmatpush1.msra.mxu0 %v260
        %420 = vmatprep.subr.mxu0 0.0
        %421 = vmatpush1.msra.mxu0 %v263
        %422 = vmatprep.subr.mxu0 0.0
        %423 = vmatpush1.msra.mxu0 %v266
        %424 = vmatprep.subr.mxu0 0.0
        %425 = vmatpush1.msra.mxu0 %v269
        %426 = vmatprep.subr.mxu0 0.0
        %427 = vmatpush1.msra.mxu0 %v272
        %428 = vmatprep.subr.mxu0 0.0
        %429 = vmatpush1.msra.mxu0 %v275
        %430 = vmatprep.subr.mxu0 0.0
        %431 = vmatpush1.msra.mxu0 %v278
        %432 = vmatprep.subr.mxu0 0.0
        %433 = vmatpush1.msra.mxu0 %v281
        %434 = vmatprep.subr.mxu0 0.0
        %435 = vmatpush1.msra.mxu0 %v284
        %436 = vmatprep.subr.mxu0 0.0
        %437 = vmatpush1.msra.mxu0 %v287
        %438 = vmatprep.subr.mxu0 0.0
        %439 = vmatpush1.msra.mxu0 %v290
        %440 = vmatprep.subr.mxu0 0.0
        %441 = vmatpush1.msra.mxu0 %v293
        %442 = vmatprep.subr.mxu0 0.0
        %443 = vmatpush1.msra.mxu0 %v296
        %444 = vmatprep.subr.mxu0 0.0
        %445 = vmatpush1.msra.mxu0 %v299
        %446 = vmatprep.subr.mxu0 0.0
        %447 = vmatpush1.msra.mxu0 %v302
        %448 = vmatprep.subr.mxu0 0.0
        %449 = vmatpush1.msra.mxu0 0.0
        %450 = vmatprep.subr.mxu0 0.0
        %451 = vmatpush1.msra.mxu0 0.0
        %452 = vmatprep.subr.mxu0 0.0
        %453 = vmatpush1.msra.mxu0 0.0
        %454 = vmatprep.subr.mxu0 0.0
        %455 = vmatpush1.msra.mxu0 0.0
        %456 = vmatprep.subr.mxu0 0.0
        %457 = vmatpush1.msra.mxu0 0.0
        %458 = vmatprep.subr.mxu0 0.0
        %459 = vmatpush1.msra.mxu0 0.0
        %460 = vmatprep.subr.mxu0 0.0
        %461 = vmatpush1.msra.mxu0 0.0
        %462 = vmatprep.subr.mxu0 0.0
        %463 = vmatpush1.msra.mxu0 0.0
        %464 = vmatprep.subr.mxu0 0.0
        %465 = vmatpush1.msra.mxu0 0.0
        %466 = vmatprep.subr.mxu0 0.0
        %467 = vmatpush1.msra.mxu0 0.0
        %468 = vmatprep.subr.mxu0 0.0
        %469 = vmatpush1.msra.mxu0 0.0
        %470 = vmatprep.subr.mxu0 0.0
        %471 = vmatpush1.msra.mxu0 0.0
        %472 = vmatprep.subr.mxu0 0.0
        %473 = vmatpush1.msra.mxu0 0.0
        %474 = vmatprep.subr.mxu0 0.0
        %475 = vmatpush1.msra.mxu0 0.0
        %476 = vmatprep.subr.mxu0 0.0
        %477 = vmatpush1.msra.mxu0 0.0
        %478 = vmatprep.subr.mxu0 0.0
        %479 = vmatpush1.msra.mxu0 0.0
        %480 = vmatprep.mubr.f32.mxu0 0.0
        %481 = vmatmul.mubr.f32.gmra.mrb[0].mxu0 %v247
        %v482 = vpop.f32.mrb[0].mxu0
        %v483 = vadd.f32 0.0, %v482
        %v484 = vpop.f32.mrb[0].mxu0
        %485 = vmatprep.mubr.f32.mxu0 0.0
        %486 = vmatmul.mubr.f32.gmra.mrb[0].mxu0 %v248
        %v487 = vpop.f32.mrb[0].mxu0
        %v488 = vadd.f32 0.0, %v487
        %v489 = vpop.f32.mrb[0].mxu0
        %490 = vmatprep.mubr.f32.mxu0 0.0
        %491 = vmatmul.mubr.f32.gmra.mrb[0].mxu0 %v249
        %v492 = vpop.f32.mrb[0].mxu0
        %v493 = vadd.f32 0.0, %v492
        %v494 = vpop.f32.mrb[0].mxu0
        %495 = vmatprep.mubr.f32.mxu0 0.0
        %496 = vmatmul.mubr.f32.gmra.mrb[0].mxu0 %v250
        %v497 = vpop.f32.mrb[0].mxu0
        %v498 = vadd.f32 0.0, %v497
        %v499 = vpop.f32.mrb[0].mxu0
        %500 = vmatprep.mubr.f32.mxu0 0.0
        %501 = vmatmul.mubr.f32.gmra.mrb[0].mxu0 %v251
        %v502 = vpop.f32.mrb[0].mxu0
        %v503 = vadd.f32 0.0, %v502
        %v504 = vpop.f32.mrb[0].mxu0
        %505 = vmatprep.mubr.f32.mxu0 0.0
        %506 = vmatmul.mubr.f32.gmra.mrb[0].mxu0 %v252
        %v507 = vpop.f32.mrb[0].mxu0
        %v508 = vadd.f32 0.0, %v507
        %v509 = vpop.f32.mrb[0].mxu0
        %510 = vmatprep.mubr.f32.mxu0 0.0
        %511 = vmatmul.mubr.f32.gmra.mrb[0].mxu0 %v253
        %v512 = vpop.f32.mrb[0].mxu0
        %v513 = vadd.f32 0.0, %v512
        %v514 = vpop.f32.mrb[0].mxu0
        %515 = vmatprep.mubr.f32.mxu0 0.0
        %516 = vmatmul.mubr.f32.gmra.mrb[0].mxu0 %v254
        %v517 = vpop.f32.mrb[0].mxu0
        %v518 = vadd.f32 0.0, %v517
        %v519 = vpop.f32.mrb[0].mxu0
        %520 = vdwg.mxu0
        %v521 = vlaneseq
        %v522 = vshrl.u32 %v521, 7
        %v523 = vadd.s32 %v522, 8
        %v524 = vadd.s32 %v522, 16
        %v525 = vadd.s32 %v522, 24
        %v526 = vadd.s32 %v522, 32
        %v527 = vadd.s32 %v522, 40
        %v528 = vadd.s32 %v522, 48
        %v529 = vadd.s32 %v522, 56
        %v530 = vlaneseq
        %v531 = vand.u32 %v530, 127
        %vm532 = vcmp.ge.s32.totalorder %v522, %v531
        %vm533 = vcmp.ge.s32.totalorder %v523, %v531
        %vm534 = vcmp.ge.s32.totalorder %v524, %v531
        %vm535 = vcmp.ge.s32.totalorder %v525, %v531
        %vm536 = vcmp.ge.s32.totalorder %v526, %v531
        %vm537 = vcmp.ge.s32.totalorder %v527, %v531
        %vm538 = vcmp.ge.s32.totalorder %v528, %v531
        %vm539 = vcmp.ge.s32.totalorder %v529, %v531
        %vm540 = vcmask 261120
        %v542 = vsel %vm540, %v370, 0
        %v545 = vsel %vm540, %v376, 0
        %v548 = vsel %vm540, %v382, 0
        %v551 = vsel %vm540, %v388, 0
        %v554 = vsel %vm540, %v394, 0
        %v557 = vsel %vm540, %v400, 0
        %v560 = vsel %vm540, %v406, 0
        %v563 = vsel %vm540, %v412, 0
        %v566 = vsel %vm540, %v372, 0
        %v569 = vsel %vm540, %v378, 0
        %v572 = vsel %vm540, %v384, 0
        %v575 = vsel %vm540, %v390, 0
        %v578 = vsel %vm540, %v396, 0
        %v581 = vsel %vm540, %v402, 0
        %v584 = vsel %vm540, %v408, 0
        %v587 = vsel %vm540, %v414, 0
        %589 = vmatprep.subr.mxu0 0.0
        %590 = vmatpush1.xpose.msra.mxu0 %v566
        %591 = vmatprep.subr.mxu0 0.0
        %592 = vmatpush1.xpose.msra.mxu0 %v569
        %593 = vmatprep.subr.mxu0 0.0
        %594 = vmatpush1.xpose.msra.mxu0 %v572
        %595 = vmatprep.subr.mxu0 0.0
        %596 = vmatpush1.xpose.msra.mxu0 %v575
        %597 = vmatprep.subr.mxu0 0.0
        %598 = vmatpush1.xpose.msra.mxu0 %v578
        %599 = vmatprep.subr.mxu0 0.0
        %600 = vmatpush1.xpose.msra.mxu0 %v581
        %601 = vmatprep.subr.mxu0 0.0
        %602 = vmatpush1.xpose.msra.mxu0 %v584
        %603 = vmatprep.subr.mxu0 0.0
        %604 = vmatpush1.xpose.msra.mxu0 %v587
        %605 = vmatprep.subr.mxu0 0.0
        %606 = vmatpush1.xpose.msra.mxu0 0.0
        %607 = vmatprep.subr.mxu0 0.0
        %608 = vmatpush1.xpose.msra.mxu0 0.0
        %609 = vmatprep.subr.mxu0 0.0
        %610 = vmatpush1.xpose.msra.mxu0 0.0
        %611 = vmatprep.subr.mxu0 0.0
        %612 = vmatpush1.xpose.msra.mxu0 0.0
        %613 = vmatprep.subr.mxu0 0.0
        %614 = vmatpush1.xpose.msra.mxu0 0.0
        %615 = vmatprep.subr.mxu0 0.0
        %616 = vmatpush1.xpose.msra.mxu0 0.0
        %617 = vmatprep.subr.mxu0 0.0
        %618 = vmatpush1.xpose.msra.mxu0 0.0
        %619 = vmatprep.subr.mxu0 0.0
        %620 = vmatpush1.xpose.msra.mxu0 0.0
        %621 = vmatprep.subr.mxu0 0.0
        %622 = vmatpush1.xpose.msra.mxu0 0.0
        %623 = vmatprep.subr.mxu0 0.0
        %624 = vmatpush1.xpose.msra.mxu0 0.0
        %625 = vmatprep.subr.mxu0 0.0
        %626 = vmatpush1.xpose.msra.mxu0 0.0
        %627 = vmatprep.subr.mxu0 0.0
        %628 = vmatpush1.xpose.msra.mxu0 0.0
        %629 = vmatprep.subr.mxu0 0.0
        %630 = vmatpush1.xpose.msra.mxu0 0.0
        %631 = vmatprep.subr.mxu0 0.0
        %632 = vmatpush1.xpose.msra.mxu0 0.0
        %633 = vmatprep.subr.mxu0 0.0
        %634 = vmatpush1.xpose.msra.mxu0 0.0
        %635 = vmatprep.subr.mxu0 0.0
        %636 = vmatpush1.xpose.msra.mxu0 0.0
        %637 = vmatprep.subr.mxu0 0.0
        %638 = vmatpush1.xpose.msra.mxu0 0.0
        %639 = vmatprep.subr.mxu0 0.0
        %640 = vmatpush1.xpose.msra.mxu0 0.0
        %641 = vmatprep.subr.mxu0 0.0
        %642 = vmatpush1.xpose.msra.mxu0 0.0
        %643 = vmatprep.subr.mxu0 0.0
        %644 = vmatpush1.xpose.msra.mxu0 0.0
        %645 = vmatprep.subr.mxu0 0.0
        %646 = vmatpush1.xpose.msra.mxu0 0.0
        %647 = vmatprep.subr.mxu0 0.0
        %648 = vmatpush1.xpose.msra.mxu0 0.0
        %649 = vmatprep.subr.mxu0 0.0
        %650 = vmatpush1.xpose.msra.mxu0 0.0
        %651 = vmatprep.subr.mxu0 0.0
        %652 = vmatpush1.xpose.msra.mxu0 0.0
        %653 = vmatprep.mubr.f32.mxu0 0.0
        %654 = vmatmul.mubr.f32.gmra.mrb[0].mxu0 %v542
        %v655 = vpop.f32.mrb[0].mxu0
        %v656 = vadd.f32 0.0, %v655
        %v657 = vpop.f32.mrb[0].mxu0
        %658 = vmatprep.mubr.f32.mxu0 0.0
        %659 = vmatmul.mubr.f32.gmra.mrb[0].mxu0 %v545
        %v660 = vpop.f32.mrb[0].mxu0
        %v661 = vadd.f32 0.0, %v660
        %v662 = vpop.f32.mrb[0].mxu0
        %663 = vmatprep.mubr.f32.mxu0 0.0
        %664 = vmatmul.mubr.f32.gmra.mrb[0].mxu0 %v548
        %v665 = vpop.f32.mrb[0].mxu0
        %v666 = vadd.f32 0.0, %v665
        %v667 = vpop.f32.mrb[0].mxu0
        %668 = vmatprep.mubr.f32.mxu0 0.0
        %669 = vmatmul.mubr.f32.gmra.mrb[0].mxu0 %v551
        %v670 = vpop.f32.mrb[0].mxu0
        %v671 = vadd.f32 0.0, %v670
        %v672 = vpop.f32.mrb[0].mxu0
        %673 = vmatprep.mubr.f32.mxu0 0.0
        %674 = vmatmul.mubr.f32.gmra.mrb[0].mxu0 %v554
        %v675 = vpop.f32.mrb[0].mxu0
        %v676 = vadd.f32 0.0, %v675
        %v677 = vpop.f32.mrb[0].mxu0
        %678 = vmatprep.mubr.f32.mxu0 0.0
        %679 = vmatmul.mubr.f32.gmra.mrb[0].mxu0 %v557
        %v680 = vpop.f32.mrb[0].mxu0
        %v681 = vadd.f32 0.0, %v680
        %v682 = vpop.f32.mrb[0].mxu0
        %683 = vmatprep.mubr.f32.mxu0 0.0
        %684 = vmatmul.mubr.f32.gmra.mrb[0].mxu0 %v560
        %v685 = vpop.f32.mrb[0].mxu0
        %v686 = vadd.f32 0.0, %v685
        %v687 = vpop.f32.mrb[0].mxu0
        %688 = vmatprep.mubr.f32.mxu0 0.0
        %689 = vmatmul.mubr.f32.gmra.mrb[0].mxu0 %v563
        %v690 = vpop.f32.mrb[0].mxu0
        %v691 = vadd.f32 0.0, %v690
        %v692 = vpop.f32.mrb[0].mxu0
        %693 = vdwg.mxu0
        %v694 = vsel %vm532, %v656, -inf
        %v695 = vsel %vm533, %v661, -inf
        %v696 = vsel %vm534, %v666, -inf
        %v697 = vsel %vm535, %v671, -inf
        %v698 = vsel %vm536, %v676, -inf
        %v699 = vsel %vm537, %v681, -inf
        %v700 = vsel %vm538, %v686, -inf
        %v701 = vsel %vm539, %v691, -inf
        %vm702 = vcmask 523264
        %v703 = vsel %vm702, %v694, -inf
        %704 = vmax.xlane.f32.xlu0 %v703
        %v705 = vpop.xlane.xlu0 %704
        %v706 = vsel %vm702, %v695, -inf
        %707 = vmax.xlane.f32.xlu0 %v706
        %v708 = vpop.xlane.xlu0 %707
        %v709 = vsel %vm702, %v696, -inf
        %710 = vmax.xlane.f32.xlu0 %v709
        %v711 = vpop.xlane.xlu0 %710
        %v712 = vsel %vm702, %v697, -inf
        %713 = vmax.xlane.f32.xlu0 %v712
        %v714 = vpop.xlane.xlu0 %713
        %v715 = vsel %vm702, %v698, -inf
        %716 = vmax.xlane.f32.xlu0 %v715
        %v717 = vpop.xlane.xlu0 %716
        %v718 = vsel %vm702, %v699, -inf
        %719 = vmax.xlane.f32.xlu0 %v718
        %v720 = vpop.xlane.xlu0 %719
        %v721 = vsel %vm702, %v700, -inf
        %722 = vmax.xlane.f32.xlu0 %v721
        %v723 = vpop.xlane.xlu0 %722
        %v724 = vsel %vm702, %v701, -inf
        %725 = vmax.xlane.f32.xlu0 %v724
        %v726 = vpop.xlane.xlu0 %725
        %v727 = vsub.f32 %v694, %v705
        %v728 = vsub.f32 %v695, %v708
        %v729 = vsub.f32 %v696, %v711
        %v730 = vsub.f32 %v697, %v714
        %v731 = vsub.f32 %v698, %v717
        %v732 = vsub.f32 %v699, %v720
        %v733 = vsub.f32 %v700, %v723
        %v734 = vsub.f32 %v701, %v726
        %v735 = vmul.f32 %v727, 1.442695
        %v736 = vpow.pop %v735
        %v737 = vmul.f32 %v728, 1.442695
        %v738 = vpow.pop %v737
        %v739 = vmul.f32 %v729, 1.442695
        %v740 = vpow.pop %v739
        %v741 = vmul.f32 %v730, 1.442695
        %v742 = vpow.pop %v741
        %v743 = vmul.f32 %v731, 1.442695
        %v744 = vpow.pop %v743
        %v745 = vmul.f32 %v732, 1.442695
        %v746 = vpow.pop %v745
        %v747 = vmul.f32 %v733, 1.442695
        %v748 = vpow.pop %v747
        %v749 = vmul.f32 %v734, 1.442695
        %v750 = vpow.pop %v749
        %v752 = vsel %vm702, %v736, 0
        %v755 = vsel %vm702, %v738, 0
        %v758 = vsel %vm702, %v740, 0
        %v761 = vsel %vm702, %v742, 0
        %v764 = vsel %vm702, %v744, 0
        %v767 = vsel %vm702, %v746, 0
        %v770 = vsel %vm702, %v748, 0
        %v773 = vsel %vm702, %v750, 0
        %775 = vmatprep.subr.mxu0 0.0
        %776 = vmatpush1.msra.mxu0 %v483
        %777 = vmatprep.subr.mxu0 0.0
        %778 = vmatpush1.msra.mxu0 %v488
        %779 = vmatprep.subr.mxu0 0.0
        %780 = vmatpush1.msra.mxu0 %v493
        %781 = vmatprep.subr.mxu0 0.0
        %782 = vmatpush1.msra.mxu0 %v498
        %783 = vmatprep.subr.mxu0 0.0
        %784 = vmatpush1.msra.mxu0 %v503
        %785 = vmatprep.subr.mxu0 0.0
        %786 = vmatpush1.msra.mxu0 %v508
        %787 = vmatprep.subr.mxu0 0.0
        %788 = vmatpush1.msra.mxu0 %v513
        %789 = vmatprep.subr.mxu0 0.0
        %790 = vmatpush1.msra.mxu0 %v518
        %791 = vmatprep.subr.mxu0 0.0
        %792 = vmatpush1.msra.mxu0 0.0
        %793 = vmatprep.subr.mxu0 0.0
        %794 = vmatpush1.msra.mxu0 0.0
        %795 = vmatprep.subr.mxu0 0.0
        %796 = vmatpush1.msra.mxu0 0.0
        %797 = vmatprep.subr.mxu0 0.0
        %798 = vmatpush1.msra.mxu0 0.0
        %799 = vmatprep.subr.mxu0 0.0
        %800 = vmatpush1.msra.mxu0 0.0
        %801 = vmatprep.subr.mxu0 0.0
        %802 = vmatpush1.msra.mxu0 0.0
        %803 = vmatprep.subr.mxu0 0.0
        %804 = vmatpush1.msra.mxu0 0.0
        %805 = vmatprep.subr.mxu0 0.0
        %806 = vmatpush1.msra.mxu0 0.0
        %807 = vmatprep.subr.mxu0 0.0
        %808 = vmatpush1.msra.mxu0 0.0
        %809 = vmatprep.subr.mxu0 0.0
        %810 = vmatpush1.msra.mxu0 0.0
        %811 = vmatprep.subr.mxu0 0.0
        %812 = vmatpush1.msra.mxu0 0.0
        %813 = vmatprep.subr.mxu0 0.0
        %814 = vmatpush1.msra.mxu0 0.0
        %815 = vmatprep.subr.mxu0 0.0
        %816 = vmatpush1.msra.mxu0 0.0
        %817 = vmatprep.subr.mxu0 0.0
        %818 = vmatpush1.msra.mxu0 0.0
        %819 = vmatprep.subr.mxu0 0.0
        %820 = vmatpush1.msra.mxu0 0.0
        %821 = vmatprep.subr.mxu0 0.0
        %822 = vmatpush1.msra.mxu0 0.0
        %823 = vmatprep.subr.mxu0 0.0
        %824 = vmatpush1.msra.mxu0 0.0
        %825 = vmatprep.subr.mxu0 0.0
        %826 = vmatpush1.msra.mxu0 0.0
        %827 = vmatprep.subr.mxu0 0.0
        %828 = vmatpush1.msra.mxu0 0.0
        %829 = vmatprep.subr.mxu0 0.0
        %830 = vmatpush1.msra.mxu0 0.0
        %831 = vmatprep.subr.mxu0 0.0
        %832 = vmatpush1.msra.mxu0 0.0
        %833 = vmatprep.subr.mxu0 0.0
        %834 = vmatpush1.msra.mxu0 0.0
        %835 = vmatprep.subr.mxu0 0.0
        %836 = vmatpush1.msra.mxu0 0.0
        %837 = vmatprep.subr.mxu0 0.0
        %838 = vmatpush1.msra.mxu0 0.0
        %839 = vmatprep.mubr.f32.mxu0 0.0
        %840 = vmatmul.mubr.f32.gmra.mrb[0].mxu0 %v752
        %v841 = vpop.f32.mrb[0].mxu0
        %v842 = vadd.f32 0.0, %v841
        %v843 = vpop.f32.mrb[0].mxu0
        %844 = vmatprep.mubr.f32.mxu0 0.0
        %845 = vmatmul.mubr.f32.gmra.mrb[0].mxu0 %v755
        %v846 = vpop.f32.mrb[0].mxu0
        %v847 = vadd.f32 0.0, %v846
        %v848 = vpop.f32.mrb[0].mxu0
        %849 = vmatprep.mubr.f32.mxu0 0.0
        %850 = vmatmul.mubr.f32.gmra.mrb[0].mxu0 %v758
        %v851 = vpop.f32.mrb[0].mxu0
        %v852 = vadd.f32 0.0, %v851
        %v853 = vpop.f32.mrb[0].mxu0
        %854 = vmatprep.mubr.f32.mxu0 0.0
        %855 = vmatmul.mubr.f32.gmra.mrb[0].mxu0 %v761
        %v856 = vpop.f32.mrb[0].mxu0
        %v857 = vadd.f32 0.0, %v856
        %v858 = vpop.f32.mrb[0].mxu0
        %859 = vmatprep.mubr.f32.mxu0 0.0
        %860 = vmatmul.mubr.f32.gmra.mrb[0].mxu0 %v764
        %v861 = vpop.f32.mrb[0].mxu0
        %v862 = vadd.f32 0.0, %v861
        %v863 = vpop.f32.mrb[0].mxu0
        %864 = vmatprep.mubr.f32.mxu0 0.0
        %865 = vmatmul.mubr.f32.gmra.mrb[0].mxu0 %v767
        %v866 = vpop.f32.mrb[0].mxu0
        %v867 = vadd.f32 0.0, %v866
        %v868 = vpop.f32.mrb[0].mxu0
        %869 = vmatprep.mubr.f32.mxu0 0.0
        %870 = vmatmul.mubr.f32.gmra.mrb[0].mxu0 %v770
        %v871 = vpop.f32.mrb[0].mxu0
        %v872 = vadd.f32 0.0, %v871
        %v873 = vpop.f32.mrb[0].mxu0
        %874 = vmatprep.mubr.f32.mxu0 0.0
        %875 = vmatmul.mubr.f32.gmra.mrb[0].mxu0 %v773
        %v876 = vpop.f32.mrb[0].mxu0
        %v877 = vadd.f32 0.0, %v876
        %v878 = vpop.f32.mrb[0].mxu0
        %879 = vdwg.mxu0
        %v880 = vsel %vm702, %v736, 0.0
        %881 = vadd.xlane.f32.xlu0 %v880
        %v882 = vpop.xlane.xlu0 %881
        %v883 = vsel %vm702, %v738, 0.0
        %884 = vadd.xlane.f32.xlu0 %v883
        %v885 = vpop.xlane.xlu0 %884
        %v886 = vsel %vm702, %v740, 0.0
        %887 = vadd.xlane.f32.xlu0 %v886
        %v888 = vpop.xlane.xlu0 %887
        %v889 = vsel %vm702, %v742, 0.0
        %890 = vadd.xlane.f32.xlu0 %v889
        %v891 = vpop.xlane.xlu0 %890
        %v892 = vsel %vm702, %v744, 0.0
        %893 = vadd.xlane.f32.xlu0 %v892
        %v894 = vpop.xlane.xlu0 %893
        %v895 = vsel %vm702, %v746, 0.0
        %896 = vadd.xlane.f32.xlu0 %v895
        %v897 = vpop.xlane.xlu0 %896
        %v898 = vsel %vm702, %v748, 0.0
        %899 = vadd.xlane.f32.xlu0 %v898
        %v900 = vpop.xlane.xlu0 %899
        %v901 = vsel %vm702, %v750, 0.0
        %902 = vadd.xlane.f32.xlu0 %v901
        %v903 = vpop.xlane.xlu0 %902
        %v904 = vrcp.pop %v882
        %v905 = vrcp.pop %v885
        %v906 = vrcp.pop %v888
        %v907 = vrcp.pop %v891
        %v908 = vrcp.pop %v894
        %v909 = vrcp.pop %v897
        %v910 = vrcp.pop %v900
        %v911 = vrcp.pop %v903
        %v912 = vmul.f32 %v842, %v904
        %v913 = vmul.f32 %v847, %v905
        %v914 = vmul.f32 %v852, %v906
        %v915 = vmul.f32 %v857, %v907
        %v916 = vmul.f32 %v862, %v908
        %v917 = vmul.f32 %v867, %v909
        %v918 = vmul.f32 %v872, %v910
        %v919 = vmul.f32 %v877, %v911
        %920 = vrot.lane.b32.xlu0 %v370, 96
        %v921 = vpop.permute.xlu0 %920
        %922 = vrot.lane.b32.xlu0 %v376, 96
        %v923 = vpop.permute.xlu0 %922
        %924 = vrot.lane.b32.xlu0 %v382, 96
        %v925 = vpop.permute.xlu0 %924
        %926 = vrot.lane.b32.xlu0 %v388, 96
        %v927 = vpop.permute.xlu0 %926
        %928 = vrot.lane.b32.xlu0 %v394, 96
        %v929 = vpop.permute.xlu0 %928
        %930 = vrot.lane.b32.xlu0 %v400, 96
        %v931 = vpop.permute.xlu0 %930
        %932 = vrot.lane.b32.xlu0 %v406, 96
        %v933 = vpop.permute.xlu0 %932
        %934 = vrot.lane.b32.xlu0 %v412, 96
        %v935 = vpop.permute.xlu0 %934
        %936 = vrot.lane.b32.xlu0 %v372, 96
        %v937 = vpop.permute.xlu0 %936
        %938 = vrot.lane.b32.xlu0 %v378, 96
        %v939 = vpop.permute.xlu0 %938
        %940 = vrot.lane.b32.xlu0 %v384, 96
        %v941 = vpop.permute.xlu0 %940
        %942 = vrot.lane.b32.xlu0 %v390, 96
        %v943 = vpop.permute.xlu0 %942
        %944 = vrot.lane.b32.xlu0 %v396, 96
        %v945 = vpop.permute.xlu0 %944
        %946 = vrot.lane.b32.xlu0 %v402, 96
        %v947 = vpop.permute.xlu0 %946
        %948 = vrot.lane.b32.xlu0 %v408, 96
        %v949 = vpop.permute.xlu0 %948
        %950 = vrot.lane.b32.xlu0 %v414, 96
        %v951 = vpop.permute.xlu0 %950
        %v952 = vsel %vm540, %v921, 0
        %v954 = vsel %vm540, %v923, 0
        %v956 = vsel %vm540, %v925, 0
        %v958 = vsel %vm540, %v927, 0
        %v960 = vsel %vm540, %v929, 0
        %v962 = vsel %vm540, %v931, 0
        %v964 = vsel %vm540, %v933, 0
        %v966 = vsel %vm540, %v935, 0
        %v968 = vsel %vm540, %v937, 0
        %v970 = vsel %vm540, %v939, 0
        %v972 = vsel %vm540, %v941, 0
        %v974 = vsel %vm540, %v943, 0
        %v976 = vsel %vm540, %v945, 0
        %v978 = vsel %vm540, %v947, 0
        %v980 = vsel %vm540, %v949, 0
        %v982 = vsel %vm540, %v951, 0
        %984 = vmatprep.subr.mxu0 0.0
        %985 = vmatpush1.xpose.msra.mxu0 %v968
        %986 = vmatprep.subr.mxu0 0.0
        %987 = vmatpush1.xpose.msra.mxu0 %v970
        %988 = vmatprep.subr.mxu0 0.0
        %989 = vmatpush1.xpose.msra.mxu0 %v972
        %990 = vmatprep.subr.mxu0 0.0
        %991 = vmatpush1.xpose.msra.mxu0 %v974
        %992 = vmatprep.subr.mxu0 0.0
        %993 = vmatpush1.xpose.msra.mxu0 %v976
        %994 = vmatprep.subr.mxu0 0.0
        %995 = vmatpush1.xpose.msra.mxu0 %v978
        %996 = vmatprep.subr.mxu0 0.0
        %997 = vmatpush1.xpose.msra.mxu0 %v980
        %998 = vmatprep.subr.mxu0 0.0
        %999 = vmatpush1.xpose.msra.mxu0 %v982
        %1000 = vmatprep.subr.mxu0 0.0
        %1001 = vmatpush1.xpose.msra.mxu0 0.0
        %1002 = vmatprep.subr.mxu0 0.0
        %1003 = vmatpush1.xpose.msra.mxu0 0.0
        %1004 = vmatprep.subr.mxu0 0.0
        %1005 = vmatpush1.xpose.msra.mxu0 0.0
        %1006 = vmatprep.subr.mxu0 0.0
        %1007 = vmatpush1.xpose.msra.mxu0 0.0
        %1008 = vmatprep.subr.mxu0 0.0
        %1009 = vmatpush1.xpose.msra.mxu0 0.0
        %1010 = vmatprep.subr.mxu0 0.0
        %1011 = vmatpush1.xpose.msra.mxu0 0.0
        %1012 = vmatprep.subr.mxu0 0.0
        %1013 = vmatpush1.xpose.msra.mxu0 0.0
        %1014 = vmatprep.subr.mxu0 0.0
        %1015 = vmatpush1.xpose.msra.mxu0 0.0
        %1016 = vmatprep.subr.mxu0 0.0
        %1017 = vmatpush1.xpose.msra.mxu0 0.0
        %1018 = vmatprep.subr.mxu0 0.0
        %1019 = vmatpush1.xpose.msra.mxu0 0.0
        %1020 = vmatprep.subr.mxu0 0.0
        %1021 = vmatpush1.xpose.msra.mxu0 0.0
        %1022 = vmatprep.subr.mxu0 0.0
        %1023 = vmatpush1.xpose.msra.mxu0 0.0
        %1024 = vmatprep.subr.mxu0 0.0
        %1025 = vmatpush1.xpose.msra.mxu0 0.0
        %1026 = vmatprep.subr.mxu0 0.0
        %1027 = vmatpush1.xpose.msra.mxu0 0.0
        %1028 = vmatprep.subr.mxu0 0.0
        %1029 = vmatpush1.xpose.msra.mxu0 0.0
        %1030 = vmatprep.subr.mxu0 0.0
        %1031 = vmatpush1.xpose.msra.mxu0 0.0
        %1032 = vmatprep.subr.mxu0 0.0
        %1033 = vmatpush1.xpose.msra.mxu0 0.0
        %1034 = vmatprep.subr.mxu0 0.0
        %1035 = vmatpush1.xpose.msra.mxu0 0.0
        %1036 = vmatprep.subr.mxu0 0.0
        %1037 = vmatpush1.xpose.msra.mxu0 0.0
        %1038 = vmatprep.subr.mxu0 0.0
        %1039 = vmatpush1.xpose.msra.mxu0 0.0
        %1040 = vmatprep.subr.mxu0 0.0
        %1041 = vmatpush1.xpose.msra.mxu0 0.0
        %1042 = vmatprep.subr.mxu0 0.0
        %1043 = vmatpush1.xpose.msra.mxu0 0.0
        %1044 = vmatprep.subr.mxu0 0.0
        %1045 = vmatpush1.xpose.msra.mxu0 0.0
        %1046 = vmatprep.subr.mxu0 0.0
        %1047 = vmatpush1.xpose.msra.mxu0 0.0
        %1048 = vmatprep.mubr.f32.mxu0 0.0
        %1049 = vmatmul.mubr.f32.gmra.mrb[0].mxu0 %v952
        %v1050 = vpop.f32.mrb[0].mxu0
        %v1051 = vadd.f32 0.0, %v1050
        %v1052 = vpop.f32.mrb[0].mxu0
        %1053 = vmatprep.mubr.f32.mxu0 0.0
        %1054 = vmatmul.mubr.f32.gmra.mrb[0].mxu0 %v954
        %v1055 = vpop.f32.mrb[0].mxu0
        %v1056 = vadd.f32 0.0, %v1055
        %v1057 = vpop.f32.mrb[0].mxu0
        %1058 = vmatprep.mubr.f32.mxu0 0.0
        %1059 = vmatmul.mubr.f32.gmra.mrb[0].mxu0 %v956
        %v1060 = vpop.f32.mrb[0].mxu0
        %v1061 = vadd.f32 0.0, %v1060
        %v1062 = vpop.f32.mrb[0].mxu0
        %1063 = vmatprep.mubr.f32.mxu0 0.0
        %1064 = vmatmul.mubr.f32.gmra.mrb[0].mxu0 %v958
        %v1065 = vpop.f32.mrb[0].mxu0
        %v1066 = vadd.f32 0.0, %v1065
        %v1067 = vpop.f32.mrb[0].mxu0
        %1068 = vmatprep.mubr.f32.mxu0 0.0
        %1069 = vmatmul.mubr.f32.gmra.mrb[0].mxu0 %v960
        %v1070 = vpop.f32.mrb[0].mxu0
        %v1071 = vadd.f32 0.0, %v1070
        %v1072 = vpop.f32.mrb[0].mxu0
        %1073 = vmatprep.mubr.f32.mxu0 0.0
        %1074 = vmatmul.mubr.f32.gmra.mrb[0].mxu0 %v962
        %v1075 = vpop.f32.mrb[0].mxu0
        %v1076 = vadd.f32 0.0, %v1075
        %v1077 = vpop.f32.mrb[0].mxu0
        %1078 = vmatprep.mubr.f32.mxu0 0.0
        %1079 = vmatmul.mubr.f32.gmra.mrb[0].mxu0 %v964
        %v1080 = vpop.f32.mrb[0].mxu0
        %v1081 = vadd.f32 0.0, %v1080
        %v1082 = vpop.f32.mrb[0].mxu0
        %1083 = vmatprep.mubr.f32.mxu0 0.0
        %1084 = vmatmul.mubr.f32.gmra.mrb[0].mxu0 %v966
        %v1085 = vpop.f32.mrb[0].mxu0
        %v1086 = vadd.f32 0.0, %v1085
        %v1087 = vpop.f32.mrb[0].mxu0
        %1088 = vdwg.mxu0
        %v1089 = vsel %vm532, %v1051, -inf
        %v1090 = vsel %vm533, %v1056, -inf
        %v1091 = vsel %vm534, %v1061, -inf
        %v1092 = vsel %vm535, %v1066, -inf
        %v1093 = vsel %vm536, %v1071, -inf
        %v1094 = vsel %vm537, %v1076, -inf
        %v1095 = vsel %vm538, %v1081, -inf
        %v1096 = vsel %vm539, %v1086, -inf
        %v1097 = vsel %vm702, %v1089, -inf
        %1098 = vmax.xlane.f32.xlu0 %v1097
        %v1099 = vpop.xlane.xlu0 %1098
        %v1100 = vsel %vm702, %v1090, -inf
        %1101 = vmax.xlane.f32.xlu0 %v1100
        %v1102 = vpop.xlane.xlu0 %1101
        %v1103 = vsel %vm702, %v1091, -inf
        %1104 = vmax.xlane.f32.xlu0 %v1103
        %v1105 = vpop.xlane.xlu0 %1104
        %v1106 = vsel %vm702, %v1092, -inf
        %1107 = vmax.xlane.f32.xlu0 %v1106
        %v1108 = vpop.xlane.xlu0 %1107
        %v1109 = vsel %vm702, %v1093, -inf
        %1110 = vmax.xlane.f32.xlu0 %v1109
        %v1111 = vpop.xlane.xlu0 %1110
        %v1112 = vsel %vm702, %v1094, -inf
        %1113 = vmax.xlane.f32.xlu0 %v1112
        %v1114 = vpop.xlane.xlu0 %1113
        %v1115 = vsel %vm702, %v1095, -inf
        %1116 = vmax.xlane.f32.xlu0 %v1115
        %v1117 = vpop.xlane.xlu0 %1116
        %v1118 = vsel %vm702, %v1096, -inf
        %1119 = vmax.xlane.f32.xlu0 %v1118
        %v1120 = vpop.xlane.xlu0 %1119
        %v1121 = vsub.f32 %v1089, %v1099
        %v1122 = vsub.f32 %v1090, %v1102
        %v1123 = vsub.f32 %v1091, %v1105
        %v1124 = vsub.f32 %v1092, %v1108
        %v1125 = vsub.f32 %v1093, %v1111
        %v1126 = vsub.f32 %v1094, %v1114
        %v1127 = vsub.f32 %v1095, %v1117
        %v1128 = vsub.f32 %v1096, %v1120
        %v1129 = vmul.f32 %v1121, 1.442695
        %v1130 = vpow.pop %v1129
        %v1131 = vmul.f32 %v1122, 1.442695
        %v1132 = vpow.pop %v1131
        %v1133 = vmul.f32 %v1123, 1.442695
        %v1134 = vpow.pop %v1133
        %v1135 = vmul.f32 %v1124, 1.442695
        %v1136 = vpow.pop %v1135
        %v1137 = vmul.f32 %v1125, 1.442695
        %v1138 = vpow.pop %v1137
        %v1139 = vmul.f32 %v1126, 1.442695
        %v1140 = vpow.pop %v1139
        %v1141 = vmul.f32 %v1127, 1.442695
        %v1142 = vpow.pop %v1141
        %v1143 = vmul.f32 %v1128, 1.442695
        %v1144 = vpow.pop %v1143
        %1153 = vrot.lane.b32.xlu0 %v483, 96
        %v1154 = vpop.permute.xlu0 %1153
        %1155 = vrot.lane.b32.xlu0 %v488, 96
        %v1156 = vpop.permute.xlu0 %1155
        %1157 = vrot.lane.b32.xlu0 %v493, 96
        %v1158 = vpop.permute.xlu0 %1157
        %1159 = vrot.lane.b32.xlu0 %v498, 96
        %v1160 = vpop.permute.xlu0 %1159
        %1161 = vrot.lane.b32.xlu0 %v503, 96
        %v1162 = vpop.permute.xlu0 %1161
        %1163 = vrot.lane.b32.xlu0 %v508, 96
        %v1164 = vpop.permute.xlu0 %1163
        %1165 = vrot.lane.b32.xlu0 %v513, 96
        %v1166 = vpop.permute.xlu0 %1165
        %1167 = vrot.lane.b32.xlu0 %v518, 96
        %v1168 = vpop.permute.xlu0 %1167
        %v1178 = vsel %vm702, %v1130, 0
        %v1181 = vsel %vm702, %v1132, 0
        %v1184 = vsel %vm702, %v1134, 0
        %v1187 = vsel %vm702, %v1136, 0
        %v1190 = vsel %vm702, %v1138, 0
        %v1193 = vsel %vm702, %v1140, 0
        %v1196 = vsel %vm702, %v1142, 0
        %v1199 = vsel %vm702, %v1144, 0
        %1201 = vmatprep.subr.mxu0 0.0
        %1202 = vmatpush1.msra.mxu0 %v1154
        %1203 = vmatprep.subr.mxu0 0.0
        %1204 = vmatpush1.msra.mxu0 %v1156
        %1205 = vmatprep.subr.mxu0 0.0
        %1206 = vmatpush1.msra.mxu0 %v1158
        %1207 = vmatprep.subr.mxu0 0.0
        %1208 = vmatpush1.msra.mxu0 %v1160
        %1209 = vmatprep.subr.mxu0 0.0
        %1210 = vmatpush1.msra.mxu0 %v1162
        %1211 = vmatprep.subr.mxu0 0.0
        %1212 = vmatpush1.msra.mxu0 %v1164
        %1213 = vmatprep.subr.mxu0 0.0
        %1214 = vmatpush1.msra.mxu0 %v1166
        %1215 = vmatprep.subr.mxu0 0.0
        %1216 = vmatpush1.msra.mxu0 %v1168
        %1217 = vmatprep.subr.mxu0 0.0
        %1218 = vmatpush1.msra.mxu0 0.0
        %1219 = vmatprep.subr.mxu0 0.0
        %1220 = vmatpush1.msra.mxu0 0.0
        %1221 = vmatprep.subr.mxu0 0.0
        %1222 = vmatpush1.msra.mxu0 0.0
        %1223 = vmatprep.subr.mxu0 0.0
        %1224 = vmatpush1.msra.mxu0 0.0
        %1225 = vmatprep.subr.mxu0 0.0
        %1226 = vmatpush1.msra.mxu0 0.0
        %1227 = vmatprep.subr.mxu0 0.0
        %1228 = vmatpush1.msra.mxu0 0.0
        %1229 = vmatprep.subr.mxu0 0.0
        %1230 = vmatpush1.msra.mxu0 0.0
        %1231 = vmatprep.subr.mxu0 0.0
        %1232 = vmatpush1.msra.mxu0 0.0
        %1233 = vmatprep.subr.mxu0 0.0
        %1234 = vmatpush1.msra.mxu0 0.0
        %1235 = vmatprep.subr.mxu0 0.0
        %1236 = vmatpush1.msra.mxu0 0.0
        %1237 = vmatprep.subr.mxu0 0.0
        %1238 = vmatpush1.msra.mxu0 0.0
        %1239 = vmatprep.subr.mxu0 0.0
        %1240 = vmatpush1.msra.mxu0 0.0
        %1241 = vmatprep.subr.mxu0 0.0
        %1242 = vmatpush1.msra.mxu0 0.0
        %1243 = vmatprep.subr.mxu0 0.0
        %1244 = vmatpush1.msra.mxu0 0.0
        %1245 = vmatprep.subr.mxu0 0.0
        %1246 = vmatpush1.msra.mxu0 0.0
        %1247 = vmatprep.subr.mxu0 0.0
        %1248 = vmatpush1.msra.mxu0 0.0
        %1249 = vmatprep.subr.mxu0 0.0
        %1250 = vmatpush1.msra.mxu0 0.0
        %1251 = vmatprep.subr.mxu0 0.0
        %1252 = vmatpush1.msra.mxu0 0.0
        %1253 = vmatprep.subr.mxu0 0.0
        %1254 = vmatpush1.msra.mxu0 0.0
        %1255 = vmatprep.subr.mxu0 0.0
        %1256 = vmatpush1.msra.mxu0 0.0
        %1257 = vmatprep.subr.mxu0 0.0
        %1258 = vmatpush1.msra.mxu0 0.0
        %1259 = vmatprep.subr.mxu0 0.0
        %1260 = vmatpush1.msra.mxu0 0.0
        %1261 = vmatprep.subr.mxu0 0.0
        %1262 = vmatpush1.msra.mxu0 0.0
        %1263 = vmatprep.subr.mxu0 0.0
        %1264 = vmatpush1.msra.mxu0 0.0
        %1265 = vmatprep.mubr.f32.mxu0 0.0
        %1266 = vmatmul.mubr.f32.gmra.mrb[0].mxu0 %v1178
        %v1267 = vpop.f32.mrb[0].mxu0
        %v1268 = vadd.f32 0.0, %v1267
        %v1269 = vpop.f32.mrb[0].mxu0
        %1270 = vmatprep.mubr.f32.mxu0 0.0
        %1271 = vmatmul.mubr.f32.gmra.mrb[0].mxu0 %v1181
        %v1272 = vpop.f32.mrb[0].mxu0
        %v1273 = vadd.f32 0.0, %v1272
        %v1274 = vpop.f32.mrb[0].mxu0
        %1275 = vmatprep.mubr.f32.mxu0 0.0
        %1276 = vmatmul.mubr.f32.gmra.mrb[0].mxu0 %v1184
        %v1277 = vpop.f32.mrb[0].mxu0
        %v1278 = vadd.f32 0.0, %v1277
        %v1279 = vpop.f32.mrb[0].mxu0
        %1280 = vmatprep.mubr.f32.mxu0 0.0
        %1281 = vmatmul.mubr.f32.gmra.mrb[0].mxu0 %v1187
        %v1282 = vpop.f32.mrb[0].mxu0
        %v1283 = vadd.f32 0.0, %v1282
        %v1284 = vpop.f32.mrb[0].mxu0
        %1285 = vmatprep.mubr.f32.mxu0 0.0
        %1286 = vmatmul.mubr.f32.gmra.mrb[0].mxu0 %v1190
        %v1287 = vpop.f32.mrb[0].mxu0
        %v1288 = vadd.f32 0.0, %v1287
        %v1289 = vpop.f32.mrb[0].mxu0
        %1290 = vmatprep.mubr.f32.mxu0 0.0
        %1291 = vmatmul.mubr.f32.gmra.mrb[0].mxu0 %v1193
        %v1292 = vpop.f32.mrb[0].mxu0
        %v1293 = vadd.f32 0.0, %v1292
        %v1294 = vpop.f32.mrb[0].mxu0
        %1295 = vmatprep.mubr.f32.mxu0 0.0
        %1296 = vmatmul.mubr.f32.gmra.mrb[0].mxu0 %v1196
        %v1297 = vpop.f32.mrb[0].mxu0
        %v1298 = vadd.f32 0.0, %v1297
        %v1299 = vpop.f32.mrb[0].mxu0
        %1300 = vmatprep.mubr.f32.mxu0 0.0
        %1301 = vmatmul.mubr.f32.gmra.mrb[0].mxu0 %v1199
        %v1302 = vpop.f32.mrb[0].mxu0
        %v1303 = vadd.f32 0.0, %v1302
        %v1304 = vpop.f32.mrb[0].mxu0
        %1305 = vdwg.mxu0
        %v1306 = vsel %vm702, %v1130, 0.0
        %1307 = vadd.xlane.f32.xlu0 %v1306
        %v1308 = vpop.xlane.xlu0 %1307
        %v1309 = vsel %vm702, %v1132, 0.0
        %1310 = vadd.xlane.f32.xlu0 %v1309
        %v1311 = vpop.xlane.xlu0 %1310
        %v1312 = vsel %vm702, %v1134, 0.0
        %1313 = vadd.xlane.f32.xlu0 %v1312
        %v1314 = vpop.xlane.xlu0 %1313
        %v1315 = vsel %vm702, %v1136, 0.0
        %1316 = vadd.xlane.f32.xlu0 %v1315
        %v1317 = vpop.xlane.xlu0 %1316
        %v1318 = vsel %vm702, %v1138, 0.0
        %1319 = vadd.xlane.f32.xlu0 %v1318
        %v1320 = vpop.xlane.xlu0 %1319
        %v1321 = vsel %vm702, %v1140, 0.0
        %1322 = vadd.xlane.f32.xlu0 %v1321
        %v1323 = vpop.xlane.xlu0 %1322
        %v1324 = vsel %vm702, %v1142, 0.0
        %1325 = vadd.xlane.f32.xlu0 %v1324
        %v1326 = vpop.xlane.xlu0 %1325
        %v1327 = vsel %vm702, %v1144, 0.0
        %1328 = vadd.xlane.f32.xlu0 %v1327
        %v1329 = vpop.xlane.xlu0 %1328
        %v1330 = vrcp.pop %v1308
        %v1331 = vrcp.pop %v1311
        %v1332 = vrcp.pop %v1314
        %v1333 = vrcp.pop %v1317
        %v1334 = vrcp.pop %v1320
        %v1335 = vrcp.pop %v1323
        %v1336 = vrcp.pop %v1326
        %v1337 = vrcp.pop %v1329
        %v1338 = vmul.f32 %v1268, %v1330
        %v1339 = vmul.f32 %v1273, %v1331
        %v1340 = vmul.f32 %v1278, %v1332
        %v1341 = vmul.f32 %v1283, %v1333
        %v1342 = vmul.f32 %v1288, %v1334
        %v1343 = vmul.f32 %v1293, %v1335
        %v1344 = vmul.f32 %v1298, %v1336
        %v1345 = vmul.f32 %v1303, %v1337
        %1346 = vrot.lane.b32.xlu0 %v370, 64
        %v1347 = vpop.permute.xlu0 %1346
        %1348 = vrot.lane.b32.xlu0 %v376, 64
        %v1349 = vpop.permute.xlu0 %1348
        %1350 = vrot.lane.b32.xlu0 %v382, 64
        %v1351 = vpop.permute.xlu0 %1350
        %1352 = vrot.lane.b32.xlu0 %v388, 64
        %v1353 = vpop.permute.xlu0 %1352
        %1354 = vrot.lane.b32.xlu0 %v394, 64
        %v1355 = vpop.permute.xlu0 %1354
        %1356 = vrot.lane.b32.xlu0 %v400, 64
        %v1357 = vpop.permute.xlu0 %1356
        %1358 = vrot.lane.b32.xlu0 %v406, 64
        %v1359 = vpop.permute.xlu0 %1358
        %1360 = vrot.lane.b32.xlu0 %v412, 64
        %v1361 = vpop.permute.xlu0 %1360
        %1362 = vrot.lane.b32.xlu0 %v372, 64
        %v1363 = vpop.permute.xlu0 %1362
        %1364 = vrot.lane.b32.xlu0 %v378, 64
        %v1365 = vpop.permute.xlu0 %1364
        %1366 = vrot.lane.b32.xlu0 %v384, 64
        %v1367 = vpop.permute.xlu0 %1366
        %1368 = vrot.lane.b32.xlu0 %v390, 64
        %v1369 = vpop.permute.xlu0 %1368
        %1370 = vrot.lane.b32.xlu0 %v396, 64
        %v1371 = vpop.permute.xlu0 %1370
        %1372 = vrot.lane.b32.xlu0 %v402, 64
        %v1373 = vpop.permute.xlu0 %1372
        %1374 = vrot.lane.b32.xlu0 %v408, 64
        %v1375 = vpop.permute.xlu0 %1374
        %1376 = vrot.lane.b32.xlu0 %v414, 64
        %v1377 = vpop.permute.xlu0 %1376
        %v1378 = vsel %vm540, %v1347, 0
        %v1380 = vsel %vm540, %v1349, 0
        %v1382 = vsel %vm540, %v1351, 0
        %v1384 = vsel %vm540, %v1353, 0
        %v1386 = vsel %vm540, %v1355, 0
        %v1388 = vsel %vm540, %v1357, 0
        %v1390 = vsel %vm540, %v1359, 0
        %v1392 = vsel %vm540, %v1361, 0
        %v1394 = vsel %vm540, %v1363, 0
        %v1396 = vsel %vm540, %v1365, 0
        %v1398 = vsel %vm540, %v1367, 0
        %v1400 = vsel %vm540, %v1369, 0
        %v1402 = vsel %vm540, %v1371, 0
        %v1404 = vsel %vm540, %v1373, 0
        %v1406 = vsel %vm540, %v1375, 0
        %v1408 = vsel %vm540, %v1377, 0
        %1410 = vmatprep.subr.mxu0 0.0
        %1411 = vmatpush1.xpose.msra.mxu0 %v1394
        %1412 = vmatprep.subr.mxu0 0.0
        %1413 = vmatpush1.xpose.msra.mxu0 %v1396
        %1414 = vmatprep.subr.mxu0 0.0
        %1415 = vmatpush1.xpose.msra.mxu0 %v1398
        %1416 = vmatprep.subr.mxu0 0.0
        %1417 = vmatpush1.xpose.msra.mxu0 %v1400
        %1418 = vmatprep.subr.mxu0 0.0
        %1419 = vmatpush1.xpose.msra.mxu0 %v1402
        %1420 = vmatprep.subr.mxu0 0.0
        %1421 = vmatpush1.xpose.msra.mxu0 %v1404
        %1422 = vmatprep.subr.mxu0 0.0
        %1423 = vmatpush1.xpose.msra.mxu0 %v1406
        %1424 = vmatprep.subr.mxu0 0.0
        %1425 = vmatpush1.xpose.msra.mxu0 %v1408
        %1426 = vmatprep.subr.mxu0 0.0
        %1427 = vmatpush1.xpose.msra.mxu0 0.0
        %1428 = vmatprep.subr.mxu0 0.0
        %1429 = vmatpush1.xpose.msra.mxu0 0.0
        %1430 = vmatprep.subr.mxu0 0.0
        %1431 = vmatpush1.xpose.msra.mxu0 0.0
        %1432 = vmatprep.subr.mxu0 0.0
        %1433 = vmatpush1.xpose.msra.mxu0 0.0
        %1434 = vmatprep.subr.mxu0 0.0
        %1435 = vmatpush1.xpose.msra.mxu0 0.0
        %1436 = vmatprep.subr.mxu0 0.0
        %1437 = vmatpush1.xpose.msra.mxu0 0.0
        %1438 = vmatprep.subr.mxu0 0.0
        %1439 = vmatpush1.xpose.msra.mxu0 0.0
        %1440 = vmatprep.subr.mxu0 0.0
        %1441 = vmatpush1.xpose.msra.mxu0 0.0
        %1442 = vmatprep.subr.mxu0 0.0
        %1443 = vmatpush1.xpose.msra.mxu0 0.0
        %1444 = vmatprep.subr.mxu0 0.0
        %1445 = vmatpush1.xpose.msra.mxu0 0.0
        %1446 = vmatprep.subr.mxu0 0.0
        %1447 = vmatpush1.xpose.msra.mxu0 0.0
        %1448 = vmatprep.subr.mxu0 0.0
        %1449 = vmatpush1.xpose.msra.mxu0 0.0
        %1450 = vmatprep.subr.mxu0 0.0
        %1451 = vmatpush1.xpose.msra.mxu0 0.0
        %1452 = vmatprep.subr.mxu0 0.0
        %1453 = vmatpush1.xpose.msra.mxu0 0.0
        %1454 = vmatprep.subr.mxu0 0.0
        %1455 = vmatpush1.xpose.msra.mxu0 0.0
        %1456 = vmatprep.subr.mxu0 0.0
        %1457 = vmatpush1.xpose.msra.mxu0 0.0
        %1458 = vmatprep.subr.mxu0 0.0
        %1459 = vmatpush1.xpose.msra.mxu0 0.0
        %1460 = vmatprep.subr.mxu0 0.0
        %1461 = vmatpush1.xpose.msra.mxu0 0.0
        %1462 = vmatprep.subr.mxu0 0.0
        %1463 = vmatpush1.xpose.msra.mxu0 0.0
        %1464 = vmatprep.subr.mxu0 0.0
        %1465 = vmatpush1.xpose.msra.mxu0 0.0
        %1466 = vmatprep.subr.mxu0 0.0
        %1467 = vmatpush1.xpose.msra.mxu0 0.0
        %1468 = vmatprep.subr.mxu0 0.0
        %1469 = vmatpush1.xpose.msra.mxu0 0.0
        %1470 = vmatprep.subr.mxu0 0.0
        %1471 = vmatpush1.xpose.msra.mxu0 0.0
        %1472 = vmatprep.subr.mxu0 0.0
        %1473 = vmatpush1.xpose.msra.mxu0 0.0
        %1474 = vmatprep.mubr.f32.mxu0 0.0
        %1475 = vmatmul.mubr.f32.gmra.mrb[0].mxu0 %v1378
        %v1476 = vpop.f32.mrb[0].mxu0
        %v1477 = vadd.f32 0.0, %v1476
        %v1478 = vpop.f32.mrb[0].mxu0
        %1479 = vmatprep.mubr.f32.mxu0 0.0
        %1480 = vmatmul.mubr.f32.gmra.mrb[0].mxu0 %v1380
        %v1481 = vpop.f32.mrb[0].mxu0
        %v1482 = vadd.f32 0.0, %v1481
        %v1483 = vpop.f32.mrb[0].mxu0
        %1484 = vmatprep.mubr.f32.mxu0 0.0
        %1485 = vmatmul.mubr.f32.gmra.mrb[0].mxu0 %v1382
        %v1486 = vpop.f32.mrb[0].mxu0
        %v1487 = vadd.f32 0.0, %v1486
        %v1488 = vpop.f32.mrb[0].mxu0
        %1489 = vmatprep.mubr.f32.mxu0 0.0
        %1490 = vmatmul.mubr.f32.gmra.mrb[0].mxu0 %v1384
        %v1491 = vpop.f32.mrb[0].mxu0
        %v1492 = vadd.f32 0.0, %v1491
        %v1493 = vpop.f32.mrb[0].mxu0
        %1494 = vmatprep.mubr.f32.mxu0 0.0
        %1495 = vmatmul.mubr.f32.gmra.mrb[0].mxu0 %v1386
        %v1496 = vpop.f32.mrb[0].mxu0
        %v1497 = vadd.f32 0.0, %v1496
        %v1498 = vpop.f32.mrb[0].mxu0
        %1499 = vmatprep.mubr.f32.mxu0 0.0
        %1500 = vmatmul.mubr.f32.gmra.mrb[0].mxu0 %v1388
        %v1501 = vpop.f32.mrb[0].mxu0
        %v1502 = vadd.f32 0.0, %v1501
        %v1503 = vpop.f32.mrb[0].mxu0
        %1504 = vmatprep.mubr.f32.mxu0 0.0
        %1505 = vmatmul.mubr.f32.gmra.mrb[0].mxu0 %v1390
        %v1506 = vpop.f32.mrb[0].mxu0
        %v1507 = vadd.f32 0.0, %v1506
        %v1508 = vpop.f32.mrb[0].mxu0
        %1509 = vmatprep.mubr.f32.mxu0 0.0
        %1510 = vmatmul.mubr.f32.gmra.mrb[0].mxu0 %v1392
        %v1511 = vpop.f32.mrb[0].mxu0
        %v1512 = vadd.f32 0.0, %v1511
        %v1513 = vpop.f32.mrb[0].mxu0
        %1514 = vdwg.mxu0
        %v1515 = vsel %vm532, %v1477, -inf
        %v1516 = vsel %vm533, %v1482, -inf
        %v1517 = vsel %vm534, %v1487, -inf
        %v1518 = vsel %vm535, %v1492, -inf
        %v1519 = vsel %vm536, %v1497, -inf
        %v1520 = vsel %vm537, %v1502, -inf
        %v1521 = vsel %vm538, %v1507, -inf
        %v1522 = vsel %vm539, %v1512, -inf
        %v1523 = vsel %vm702, %v1515, -inf
        %1524 = vmax.xlane.f32.xlu0 %v1523
        %v1525 = vpop.xlane.xlu0 %1524
        %v1526 = vsel %vm702, %v1516, -inf
        %1527 = vmax.xlane.f32.xlu0 %v1526
        %v1528 = vpop.xlane.xlu0 %1527
        %v1529 = vsel %vm702, %v1517, -inf
        %1530 = vmax.xlane.f32.xlu0 %v1529
        %v1531 = vpop.xlane.xlu0 %1530
        %v1532 = vsel %vm702, %v1518, -inf
        %1533 = vmax.xlane.f32.xlu0 %v1532
        %v1534 = vpop.xlane.xlu0 %1533
        %v1535 = vsel %vm702, %v1519, -inf
        %1536 = vmax.xlane.f32.xlu0 %v1535
        %v1537 = vpop.xlane.xlu0 %1536
        %v1538 = vsel %vm702, %v1520, -inf
        %1539 = vmax.xlane.f32.xlu0 %v1538
        %v1540 = vpop.xlane.xlu0 %1539
        %v1541 = vsel %vm702, %v1521, -inf
        %1542 = vmax.xlane.f32.xlu0 %v1541
        %v1543 = vpop.xlane.xlu0 %1542
        %v1544 = vsel %vm702, %v1522, -inf
        %1545 = vmax.xlane.f32.xlu0 %v1544
        %v1546 = vpop.xlane.xlu0 %1545
        %v1547 = vsub.f32 %v1515, %v1525
        %v1548 = vsub.f32 %v1516, %v1528
        %v1549 = vsub.f32 %v1517, %v1531
        %v1550 = vsub.f32 %v1518, %v1534
        %v1551 = vsub.f32 %v1519, %v1537
        %v1552 = vsub.f32 %v1520, %v1540
        %v1553 = vsub.f32 %v1521, %v1543
        %v1554 = vsub.f32 %v1522, %v1546
        %v1555 = vmul.f32 %v1547, 1.442695
        %v1556 = vpow.pop %v1555
        %v1557 = vmul.f32 %v1548, 1.442695
        %v1558 = vpow.pop %v1557
        %v1559 = vmul.f32 %v1549, 1.442695
        %v1560 = vpow.pop %v1559
        %v1561 = vmul.f32 %v1550, 1.442695
        %v1562 = vpow.pop %v1561
        %v1563 = vmul.f32 %v1551, 1.442695
        %v1564 = vpow.pop %v1563
        %v1565 = vmul.f32 %v1552, 1.442695
        %v1566 = vpow.pop %v1565
        %v1567 = vmul.f32 %v1553, 1.442695
        %v1568 = vpow.pop %v1567
        %v1569 = vmul.f32 %v1554, 1.442695
        %v1570 = vpow.pop %v1569
        %1571 = vrot.lane.b32.xlu0 %v483, 64
        %v1572 = vpop.permute.xlu0 %1571
        %1573 = vrot.lane.b32.xlu0 %v488, 64
        %v1574 = vpop.permute.xlu0 %1573
        %1575 = vrot.lane.b32.xlu0 %v493, 64
        %v1576 = vpop.permute.xlu0 %1575
        %1577 = vrot.lane.b32.xlu0 %v498, 64
        %v1578 = vpop.permute.xlu0 %1577
        %1579 = vrot.lane.b32.xlu0 %v503, 64
        %v1580 = vpop.permute.xlu0 %1579
        %1581 = vrot.lane.b32.xlu0 %v508, 64
        %v1582 = vpop.permute.xlu0 %1581
        %1583 = vrot.lane.b32.xlu0 %v513, 64
        %v1584 = vpop.permute.xlu0 %1583
        %1585 = vrot.lane.b32.xlu0 %v518, 64
        %v1586 = vpop.permute.xlu0 %1585
        %v1596 = vsel %vm702, %v1556, 0
        %v1599 = vsel %vm702, %v1558, 0
        %v1602 = vsel %vm702, %v1560, 0
        %v1605 = vsel %vm702, %v1562, 0
        %v1608 = vsel %vm702, %v1564, 0
        %v1611 = vsel %vm702, %v1566, 0
        %v1614 = vsel %vm702, %v1568, 0
        %v1617 = vsel %vm702, %v1570, 0
        %1619 = vmatprep.subr.mxu0 0.0
        %1620 = vmatpush1.msra.mxu0 %v1572
        %1621 = vmatprep.subr.mxu0 0.0
        %1622 = vmatpush1.msra.mxu0 %v1574
        %1623 = vmatprep.subr.mxu0 0.0
        %1624 = vmatpush1.msra.mxu0 %v1576
        %1625 = vmatprep.subr.mxu0 0.0
        %1626 = vmatpush1.msra.mxu0 %v1578
        %1627 = vmatprep.subr.mxu0 0.0
        %1628 = vmatpush1.msra.mxu0 %v1580
        %1629 = vmatprep.subr.mxu0 0.0
        %1630 = vmatpush1.msra.mxu0 %v1582
        %1631 = vmatprep.subr.mxu0 0.0
        %1632 = vmatpush1.msra.mxu0 %v1584
        %1633 = vmatprep.subr.mxu0 0.0
        %1634 = vmatpush1.msra.mxu0 %v1586
        %1635 = vmatprep.subr.mxu0 0.0
        %1636 = vmatpush1.msra.mxu0 0.0
        %1637 = vmatprep.subr.mxu0 0.0
        %1638 = vmatpush1.msra.mxu0 0.0
        %1639 = vmatprep.subr.mxu0 0.0
        %1640 = vmatpush1.msra.mxu0 0.0
        %1641 = vmatprep.subr.mxu0 0.0
        %1642 = vmatpush1.msra.mxu0 0.0
        %1643 = vmatprep.subr.mxu0 0.0
        %1644 = vmatpush1.msra.mxu0 0.0
        %1645 = vmatprep.subr.mxu0 0.0
        %1646 = vmatpush1.msra.mxu0 0.0
        %1647 = vmatprep.subr.mxu0 0.0
        %1648 = vmatpush1.msra.mxu0 0.0
        %1649 = vmatprep.subr.mxu0 0.0
        %1650 = vmatpush1.msra.mxu0 0.0
        %1651 = vmatprep.subr.mxu0 0.0
        %1652 = vmatpush1.msra.mxu0 0.0
        %1653 = vmatprep.subr.mxu0 0.0
        %1654 = vmatpush1.msra.mxu0 0.0
        %1655 = vmatprep.subr.mxu0 0.0
        %1656 = vmatpush1.msra.mxu0 0.0
        %1657 = vmatprep.subr.mxu0 0.0
        %1658 = vmatpush1.msra.mxu0 0.0
        %1659 = vmatprep.subr.mxu0 0.0
        %1660 = vmatpush1.msra.mxu0 0.0
        %1661 = vmatprep.subr.mxu0 0.0
        %1662 = vmatpush1.msra.mxu0 0.0
        %1663 = vmatprep.subr.mxu0 0.0
        %1664 = vmatpush1.msra.mxu0 0.0
        %1665 = vmatprep.subr.mxu0 0.0
        %1666 = vmatpush1.msra.mxu0 0.0
        %1667 = vmatprep.subr.mxu0 0.0
        %1668 = vmatpush1.msra.mxu0 0.0
        %1669 = vmatprep.subr.mxu0 0.0
        %1670 = vmatpush1.msra.mxu0 0.0
        %1671 = vmatprep.subr.mxu0 0.0
        %1672 = vmatpush1.msra.mxu0 0.0
        %1673 = vmatprep.subr.mxu0 0.0
        %1674 = vmatpush1.msra.mxu0 0.0
        %1675 = vmatprep.subr.mxu0 0.0
        %1676 = vmatpush1.msra.mxu0 0.0
        %1677 = vmatprep.subr.mxu0 0.0
        %1678 = vmatpush1.msra.mxu0 0.0
        %1679 = vmatprep.subr.mxu0 0.0
        %1680 = vmatpush1.msra.mxu0 0.0
        %1681 = vmatprep.subr.mxu0 0.0
        %1682 = vmatpush1.msra.mxu0 0.0
        %1683 = vmatprep.mubr.f32.mxu0 0.0
        %1684 = vmatmul.mubr.f32.gmra.mrb[0].mxu0 %v1596
        %v1685 = vpop.f32.mrb[0].mxu0
        %v1686 = vadd.f32 0.0, %v1685
        %v1687 = vpop.f32.mrb[0].mxu0
        %1688 = vmatprep.mubr.f32.mxu0 0.0
        %1689 = vmatmul.mubr.f32.gmra.mrb[0].mxu0 %v1599
        %v1690 = vpop.f32.mrb[0].mxu0
        %v1691 = vadd.f32 0.0, %v1690
        %v1692 = vpop.f32.mrb[0].mxu0
        %1693 = vmatprep.mubr.f32.mxu0 0.0
        %1694 = vmatmul.mubr.f32.gmra.mrb[0].mxu0 %v1602
        %v1695 = vpop.f32.mrb[0].mxu0
        %v1696 = vadd.f32 0.0, %v1695
        %v1697 = vpop.f32.mrb[0].mxu0
        %1698 = vmatprep.mubr.f32.mxu0 0.0
        %1699 = vmatmul.mubr.f32.gmra.mrb[0].mxu0 %v1605
        %v1700 = vpop.f32.mrb[0].mxu0
        %v1701 = vadd.f32 0.0, %v1700
        %v1702 = vpop.f32.mrb[0].mxu0
        %1703 = vmatprep.mubr.f32.mxu0 0.0
        %1704 = vmatmul.mubr.f32.gmra.mrb[0].mxu0 %v1608
        %v1705 = vpop.f32.mrb[0].mxu0
        %v1706 = vadd.f32 0.0, %v1705
        %v1707 = vpop.f32.mrb[0].mxu0
        %1708 = vmatprep.mubr.f32.mxu0 0.0
        %1709 = vmatmul.mubr.f32.gmra.mrb[0].mxu0 %v1611
        %v1710 = vpop.f32.mrb[0].mxu0
        %v1711 = vadd.f32 0.0, %v1710
        %v1712 = vpop.f32.mrb[0].mxu0
        %1713 = vmatprep.mubr.f32.mxu0 0.0
        %1714 = vmatmul.mubr.f32.gmra.mrb[0].mxu0 %v1614
        %v1715 = vpop.f32.mrb[0].mxu0
        %v1716 = vadd.f32 0.0, %v1715
        %v1717 = vpop.f32.mrb[0].mxu0
        %1718 = vmatprep.mubr.f32.mxu0 0.0
        %1719 = vmatmul.mubr.f32.gmra.mrb[0].mxu0 %v1617
        %v1720 = vpop.f32.mrb[0].mxu0
        %v1721 = vadd.f32 0.0, %v1720
        %v1722 = vpop.f32.mrb[0].mxu0
        %1723 = vdwg.mxu0
        %v1724 = vsel %vm702, %v1556, 0.0
        %1725 = vadd.xlane.f32.xlu0 %v1724
        %v1726 = vpop.xlane.xlu0 %1725
        %v1727 = vsel %vm702, %v1558, 0.0
        %1728 = vadd.xlane.f32.xlu0 %v1727
        %v1729 = vpop.xlane.xlu0 %1728
        %v1730 = vsel %vm702, %v1560, 0.0
        %1731 = vadd.xlane.f32.xlu0 %v1730
        %v1732 = vpop.xlane.xlu0 %1731
        %v1733 = vsel %vm702, %v1562, 0.0
        %1734 = vadd.xlane.f32.xlu0 %v1733
        %v1735 = vpop.xlane.xlu0 %1734
        %v1736 = vsel %vm702, %v1564, 0.0
        %1737 = vadd.xlane.f32.xlu0 %v1736
        %v1738 = vpop.xlane.xlu0 %1737
        %v1739 = vsel %vm702, %v1566, 0.0
        %1740 = vadd.xlane.f32.xlu0 %v1739
        %v1741 = vpop.xlane.xlu0 %1740
        %v1742 = vsel %vm702, %v1568, 0.0
        %1743 = vadd.xlane.f32.xlu0 %v1742
        %v1744 = vpop.xlane.xlu0 %1743
        %v1745 = vsel %vm702, %v1570, 0.0
        %1746 = vadd.xlane.f32.xlu0 %v1745
        %v1747 = vpop.xlane.xlu0 %1746
        %v1748 = vrcp.pop %v1726
        %v1749 = vrcp.pop %v1729
        %v1750 = vrcp.pop %v1732
        %v1751 = vrcp.pop %v1735
        %v1752 = vrcp.pop %v1738
        %v1753 = vrcp.pop %v1741
        %v1754 = vrcp.pop %v1744
        %v1755 = vrcp.pop %v1747
        %v1756 = vmul.f32 %v1686, %v1748
        %v1757 = vmul.f32 %v1691, %v1749
        %v1758 = vmul.f32 %v1696, %v1750
        %v1759 = vmul.f32 %v1701, %v1751
        %v1760 = vmul.f32 %v1706, %v1752
        %v1761 = vmul.f32 %v1711, %v1753
        %v1762 = vmul.f32 %v1716, %v1754
        %v1763 = vmul.f32 %v1721, %v1755
        %1764 = vrot.lane.b32.xlu0 %v370, 32
        %v1765 = vpop.permute.xlu0 %1764
        %1766 = vrot.lane.b32.xlu0 %v376, 32
        %v1767 = vpop.permute.xlu0 %1766
        %1768 = vrot.lane.b32.xlu0 %v382, 32
        %v1769 = vpop.permute.xlu0 %1768
        %1770 = vrot.lane.b32.xlu0 %v388, 32
        %v1771 = vpop.permute.xlu0 %1770
        %1772 = vrot.lane.b32.xlu0 %v394, 32
        %v1773 = vpop.permute.xlu0 %1772
        %1774 = vrot.lane.b32.xlu0 %v400, 32
        %v1775 = vpop.permute.xlu0 %1774
        %1776 = vrot.lane.b32.xlu0 %v406, 32
        %v1777 = vpop.permute.xlu0 %1776
        %1778 = vrot.lane.b32.xlu0 %v412, 32
        %v1779 = vpop.permute.xlu0 %1778
        %1780 = vrot.lane.b32.xlu0 %v372, 32
        %v1781 = vpop.permute.xlu0 %1780
        %1782 = vrot.lane.b32.xlu0 %v378, 32
        %v1783 = vpop.permute.xlu0 %1782
        %1784 = vrot.lane.b32.xlu0 %v384, 32
        %v1785 = vpop.permute.xlu0 %1784
        %1786 = vrot.lane.b32.xlu0 %v390, 32
        %v1787 = vpop.permute.xlu0 %1786
        %1788 = vrot.lane.b32.xlu0 %v396, 32
        %v1789 = vpop.permute.xlu0 %1788
        %1790 = vrot.lane.b32.xlu0 %v402, 32
        %v1791 = vpop.permute.xlu0 %1790
        %1792 = vrot.lane.b32.xlu0 %v408, 32
        %v1793 = vpop.permute.xlu0 %1792
        %1794 = vrot.lane.b32.xlu0 %v414, 32
        %v1795 = vpop.permute.xlu0 %1794
        %v1796 = vsel %vm540, %v1765, 0
        %v1798 = vsel %vm540, %v1767, 0
        %v1800 = vsel %vm540, %v1769, 0
        %v1802 = vsel %vm540, %v1771, 0
        %v1804 = vsel %vm540, %v1773, 0
        %v1806 = vsel %vm540, %v1775, 0
        %v1808 = vsel %vm540, %v1777, 0
        %v1810 = vsel %vm540, %v1779, 0
        %v1812 = vsel %vm540, %v1781, 0
        %v1814 = vsel %vm540, %v1783, 0
        %v1816 = vsel %vm540, %v1785, 0
        %v1818 = vsel %vm540, %v1787, 0
        %v1820 = vsel %vm540, %v1789, 0
        %v1822 = vsel %vm540, %v1791, 0
        %v1824 = vsel %vm540, %v1793, 0
        %v1826 = vsel %vm540, %v1795, 0
        %1828 = vmatprep.subr.mxu0 0.0
        %1829 = vmatpush1.xpose.msra.mxu0 %v1812
        %1830 = vmatprep.subr.mxu0 0.0
        %1831 = vmatpush1.xpose.msra.mxu0 %v1814
        %1832 = vmatprep.subr.mxu0 0.0
        %1833 = vmatpush1.xpose.msra.mxu0 %v1816
        %1834 = vmatprep.subr.mxu0 0.0
        %1835 = vmatpush1.xpose.msra.mxu0 %v1818
        %1836 = vmatprep.subr.mxu0 0.0
        %1837 = vmatpush1.xpose.msra.mxu0 %v1820
        %1838 = vmatprep.subr.mxu0 0.0
        %1839 = vmatpush1.xpose.msra.mxu0 %v1822
        %1840 = vmatprep.subr.mxu0 0.0
        %1841 = vmatpush1.xpose.msra.mxu0 %v1824
        %1842 = vmatprep.subr.mxu0 0.0
        %1843 = vmatpush1.xpose.msra.mxu0 %v1826
        %1844 = vmatprep.subr.mxu0 0.0
        %1845 = vmatpush1.xpose.msra.mxu0 0.0
        %1846 = vmatprep.subr.mxu0 0.0
        %1847 = vmatpush1.xpose.msra.mxu0 0.0
        %1848 = vmatprep.subr.mxu0 0.0
        %1849 = vmatpush1.xpose.msra.mxu0 0.0
        %1850 = vmatprep.subr.mxu0 0.0
        %1851 = vmatpush1.xpose.msra.mxu0 0.0
        %1852 = vmatprep.subr.mxu0 0.0
        %1853 = vmatpush1.xpose.msra.mxu0 0.0
        %1854 = vmatprep.subr.mxu0 0.0
        %1855 = vmatpush1.xpose.msra.mxu0 0.0
        %1856 = vmatprep.subr.mxu0 0.0
        %1857 = vmatpush1.xpose.msra.mxu0 0.0
        %1858 = vmatprep.subr.mxu0 0.0
        %1859 = vmatpush1.xpose.msra.mxu0 0.0
        %1860 = vmatprep.subr.mxu0 0.0
        %1861 = vmatpush1.xpose.msra.mxu0 0.0
        %1862 = vmatprep.subr.mxu0 0.0
        %1863 = vmatpush1.xpose.msra.mxu0 0.0
        %1864 = vmatprep.subr.mxu0 0.0
        %1865 = vmatpush1.xpose.msra.mxu0 0.0
        %1866 = vmatprep.subr.mxu0 0.0
        %1867 = vmatpush1.xpose.msra.mxu0 0.0
        %1868 = vmatprep.subr.mxu0 0.0
        %1869 = vmatpush1.xpose.msra.mxu0 0.0
        %1870 = vmatprep.subr.mxu0 0.0
        %1871 = vmatpush1.xpose.msra.mxu0 0.0
        %1872 = vmatprep.subr.mxu0 0.0
        %1873 = vmatpush1.xpose.msra.mxu0 0.0
        %1874 = vmatprep.subr.mxu0 0.0
        %1875 = vmatpush1.xpose.msra.mxu0 0.0
        %1876 = vmatprep.subr.mxu0 0.0
        %1877 = vmatpush1.xpose.msra.mxu0 0.0
        %1878 = vmatprep.subr.mxu0 0.0
        %1879 = vmatpush1.xpose.msra.mxu0 0.0
        %1880 = vmatprep.subr.mxu0 0.0
        %1881 = vmatpush1.xpose.msra.mxu0 0.0
        %1882 = vmatprep.subr.mxu0 0.0
        %1883 = vmatpush1.xpose.msra.mxu0 0.0
        %1884 = vmatprep.subr.mxu0 0.0
        %1885 = vmatpush1.xpose.msra.mxu0 0.0
        %1886 = vmatprep.subr.mxu0 0.0
        %1887 = vmatpush1.xpose.msra.mxu0 0.0
        %1888 = vmatprep.subr.mxu0 0.0
        %1889 = vmatpush1.xpose.msra.mxu0 0.0
        %1890 = vmatprep.subr.mxu0 0.0
        %1891 = vmatpush1.xpose.msra.mxu0 0.0
        %1892 = vmatprep.mubr.f32.mxu0 0.0
        %1893 = vmatmul.mubr.f32.gmra.mrb[0].mxu0 %v1796
        %v1894 = vpop.f32.mrb[0].mxu0
        %v1895 = vadd.f32 0.0, %v1894
        %v1896 = vpop.f32.mrb[0].mxu0
        %1897 = vmatprep.mubr.f32.mxu0 0.0
        %1898 = vmatmul.mubr.f32.gmra.mrb[0].mxu0 %v1798
        %v1899 = vpop.f32.mrb[0].mxu0
        %v1900 = vadd.f32 0.0, %v1899
        %v1901 = vpop.f32.mrb[0].mxu0
        %1902 = vmatprep.mubr.f32.mxu0 0.0
        %1903 = vmatmul.mubr.f32.gmra.mrb[0].mxu0 %v1800
        %v1904 = vpop.f32.mrb[0].mxu0
        %v1905 = vadd.f32 0.0, %v1904
        %v1906 = vpop.f32.mrb[0].mxu0
        %1907 = vmatprep.mubr.f32.mxu0 0.0
        %1908 = vmatmul.mubr.f32.gmra.mrb[0].mxu0 %v1802
        %v1909 = vpop.f32.mrb[0].mxu0
        %v1910 = vadd.f32 0.0, %v1909
        %v1911 = vpop.f32.mrb[0].mxu0
        %1912 = vmatprep.mubr.f32.mxu0 0.0
        %1913 = vmatmul.mubr.f32.gmra.mrb[0].mxu0 %v1804
        %v1914 = vpop.f32.mrb[0].mxu0
        %v1915 = vadd.f32 0.0, %v1914
        %v1916 = vpop.f32.mrb[0].mxu0
        %1917 = vmatprep.mubr.f32.mxu0 0.0
        %1918 = vmatmul.mubr.f32.gmra.mrb[0].mxu0 %v1806
        %v1919 = vpop.f32.mrb[0].mxu0
        %v1920 = vadd.f32 0.0, %v1919
        %v1921 = vpop.f32.mrb[0].mxu0
        %1922 = vmatprep.mubr.f32.mxu0 0.0
        %1923 = vmatmul.mubr.f32.gmra.mrb[0].mxu0 %v1808
        %v1924 = vpop.f32.mrb[0].mxu0
        %v1925 = vadd.f32 0.0, %v1924
        %v1926 = vpop.f32.mrb[0].mxu0
        %1927 = vmatprep.mubr.f32.mxu0 0.0
        %1928 = vmatmul.mubr.f32.gmra.mrb[0].mxu0 %v1810
        %v1929 = vpop.f32.mrb[0].mxu0
        %v1930 = vadd.f32 0.0, %v1929
        %v1931 = vpop.f32.mrb[0].mxu0
        %1932 = vdwg.mxu0
        %v1933 = vsel %vm532, %v1895, -inf
        %v1934 = vsel %vm533, %v1900, -inf
        %v1935 = vsel %vm534, %v1905, -inf
        %v1936 = vsel %vm535, %v1910, -inf
        %v1937 = vsel %vm536, %v1915, -inf
        %v1938 = vsel %vm537, %v1920, -inf
        %v1939 = vsel %vm538, %v1925, -inf
        %v1940 = vsel %vm539, %v1930, -inf
        %v1941 = vsel %vm702, %v1933, -inf
        %1942 = vmax.xlane.f32.xlu0 %v1941
        %v1943 = vpop.xlane.xlu0 %1942
        %v1944 = vsel %vm702, %v1934, -inf
        %1945 = vmax.xlane.f32.xlu0 %v1944
        %v1946 = vpop.xlane.xlu0 %1945
        %v1947 = vsel %vm702, %v1935, -inf
        %1948 = vmax.xlane.f32.xlu0 %v1947
        %v1949 = vpop.xlane.xlu0 %1948
        %v1950 = vsel %vm702, %v1936, -inf
        %1951 = vmax.xlane.f32.xlu0 %v1950
        %v1952 = vpop.xlane.xlu0 %1951
        %v1953 = vsel %vm702, %v1937, -inf
        %1954 = vmax.xlane.f32.xlu0 %v1953
        %v1955 = vpop.xlane.xlu0 %1954
        %v1956 = vsel %vm702, %v1938, -inf
        %1957 = vmax.xlane.f32.xlu0 %v1956
        %v1958 = vpop.xlane.xlu0 %1957
        %v1959 = vsel %vm702, %v1939, -inf
        %1960 = vmax.xlane.f32.xlu0 %v1959
        %v1961 = vpop.xlane.xlu0 %1960
        %v1962 = vsel %vm702, %v1940, -inf
        %1963 = vmax.xlane.f32.xlu0 %v1962
        %v1964 = vpop.xlane.xlu0 %1963
        %v1965 = vsub.f32 %v1933, %v1943
        %v1966 = vsub.f32 %v1934, %v1946
        %v1967 = vsub.f32 %v1935, %v1949
        %v1968 = vsub.f32 %v1936, %v1952
        %v1969 = vsub.f32 %v1937, %v1955
        %v1970 = vsub.f32 %v1938, %v1958
        %v1971 = vsub.f32 %v1939, %v1961
        %v1972 = vsub.f32 %v1940, %v1964
        %v1973 = vmul.f32 %v1965, 1.442695
        %v1974 = vpow.pop %v1973
        %v1975 = vmul.f32 %v1966, 1.442695
        %v1976 = vpow.pop %v1975
        %v1977 = vmul.f32 %v1967, 1.442695
        %v1978 = vpow.pop %v1977
        %v1979 = vmul.f32 %v1968, 1.442695
        %v1980 = vpow.pop %v1979
        %v1981 = vmul.f32 %v1969, 1.442695
        %v1982 = vpow.pop %v1981
        %v1983 = vmul.f32 %v1970, 1.442695
        %v1984 = vpow.pop %v1983
        %v1985 = vmul.f32 %v1971, 1.442695
        %v1986 = vpow.pop %v1985
        %v1987 = vmul.f32 %v1972, 1.442695
        %v1988 = vpow.pop %v1987
        %1989 = vrot.lane.b32.xlu0 %v483, 32
        %v1990 = vpop.permute.xlu0 %1989
        %1991 = vrot.lane.b32.xlu0 %v488, 32
        %v1992 = vpop.permute.xlu0 %1991
        %1993 = vrot.lane.b32.xlu0 %v493, 32
        %v1994 = vpop.permute.xlu0 %1993
        %1995 = vrot.lane.b32.xlu0 %v498, 32
        %v1996 = vpop.permute.xlu0 %1995
        %1997 = vrot.lane.b32.xlu0 %v503, 32
        %v1998 = vpop.permute.xlu0 %1997
        %1999 = vrot.lane.b32.xlu0 %v508, 32
        %v2000 = vpop.permute.xlu0 %1999
        %2001 = vrot.lane.b32.xlu0 %v513, 32
        %v2002 = vpop.permute.xlu0 %2001
        %2003 = vrot.lane.b32.xlu0 %v518, 32
        %v2004 = vpop.permute.xlu0 %2003
        %v2014 = vsel %vm702, %v1974, 0
        %v2017 = vsel %vm702, %v1976, 0
        %v2020 = vsel %vm702, %v1978, 0
        %v2023 = vsel %vm702, %v1980, 0
        %v2026 = vsel %vm702, %v1982, 0
        %v2029 = vsel %vm702, %v1984, 0
        %v2032 = vsel %vm702, %v1986, 0
        %v2035 = vsel %vm702, %v1988, 0
        %2037 = vmatprep.subr.mxu0 0.0
        %2038 = vmatpush1.msra.mxu0 %v1990
        %2039 = vmatprep.subr.mxu0 0.0
        %2040 = vmatpush1.msra.mxu0 %v1992
        %2041 = vmatprep.subr.mxu0 0.0
        %2042 = vmatpush1.msra.mxu0 %v1994
        %2043 = vmatprep.subr.mxu0 0.0
        %2044 = vmatpush1.msra.mxu0 %v1996
        %2045 = vmatprep.subr.mxu0 0.0
        %2046 = vmatpush1.msra.mxu0 %v1998
        %2047 = vmatprep.subr.mxu0 0.0
        %2048 = vmatpush1.msra.mxu0 %v2000
        %2049 = vmatprep.subr.mxu0 0.0
        %2050 = vmatpush1.msra.mxu0 %v2002
        %2051 = vmatprep.subr.mxu0 0.0
        %2052 = vmatpush1.msra.mxu0 %v2004
        %2053 = vmatprep.subr.mxu0 0.0
        %2054 = vmatpush1.msra.mxu0 0.0
        %2055 = vmatprep.subr.mxu0 0.0
        %2056 = vmatpush1.msra.mxu0 0.0
        %2057 = vmatprep.subr.mxu0 0.0
        %2058 = vmatpush1.msra.mxu0 0.0
        %2059 = vmatprep.subr.mxu0 0.0
        %2060 = vmatpush1.msra.mxu0 0.0
        %2061 = vmatprep.subr.mxu0 0.0
        %2062 = vmatpush1.msra.mxu0 0.0
        %2063 = vmatprep.subr.mxu0 0.0
        %2064 = vmatpush1.msra.mxu0 0.0
        %2065 = vmatprep.subr.mxu0 0.0
        %2066 = vmatpush1.msra.mxu0 0.0
        %2067 = vmatprep.subr.mxu0 0.0
        %2068 = vmatpush1.msra.mxu0 0.0
        %2069 = vmatprep.subr.mxu0 0.0
        %2070 = vmatpush1.msra.mxu0 0.0
        %2071 = vmatprep.subr.mxu0 0.0
        %2072 = vmatpush1.msra.mxu0 0.0
        %2073 = vmatprep.subr.mxu0 0.0
        %2074 = vmatpush1.msra.mxu0 0.0
        %2075 = vmatprep.subr.mxu0 0.0
        %2076 = vmatpush1.msra.mxu0 0.0
        %2077 = vmatprep.subr.mxu0 0.0
        %2078 = vmatpush1.msra.mxu0 0.0
        %2079 = vmatprep.subr.mxu0 0.0
        %2080 = vmatpush1.msra.mxu0 0.0
        %2081 = vmatprep.subr.mxu0 0.0
        %2082 = vmatpush1.msra.mxu0 0.0
        %2083 = vmatprep.subr.mxu0 0.0
        %2084 = vmatpush1.msra.mxu0 0.0
        %2085 = vmatprep.subr.mxu0 0.0
        %2086 = vmatpush1.msra.mxu0 0.0
        %2087 = vmatprep.subr.mxu0 0.0
        %2088 = vmatpush1.msra.mxu0 0.0
        %2089 = vmatprep.subr.mxu0 0.0
        %2090 = vmatpush1.msra.mxu0 0.0
        %2091 = vmatprep.subr.mxu0 0.0
        %2092 = vmatpush1.msra.mxu0 0.0
        %2093 = vmatprep.subr.mxu0 0.0
        %2094 = vmatpush1.msra.mxu0 0.0
        %2095 = vmatprep.subr.mxu0 0.0
        %2096 = vmatpush1.msra.mxu0 0.0
        %2097 = vmatprep.subr.mxu0 0.0
        %2098 = vmatpush1.msra.mxu0 0.0
        %2099 = vmatprep.subr.mxu0 0.0
        %2100 = vmatpush1.msra.mxu0 0.0
        %2101 = vmatprep.mubr.f32.mxu0 0.0
        %2102 = vmatmul.mubr.f32.gmra.mrb[0].mxu0 %v2014
        %v2103 = vpop.f32.mrb[0].mxu0
        %v2104 = vadd.f32 0.0, %v2103
        %v2105 = vpop.f32.mrb[0].mxu0
        %2106 = vmatprep.mubr.f32.mxu0 0.0
        %2107 = vmatmul.mubr.f32.gmra.mrb[0].mxu0 %v2017
        %v2108 = vpop.f32.mrb[0].mxu0
        %v2109 = vadd.f32 0.0, %v2108
        %v2110 = vpop.f32.mrb[0].mxu0
        %2111 = vmatprep.mubr.f32.mxu0 0.0
        %2112 = vmatmul.mubr.f32.gmra.mrb[0].mxu0 %v2020
        %v2113 = vpop.f32.mrb[0].mxu0
        %v2114 = vadd.f32 0.0, %v2113
        %v2115 = vpop.f32.mrb[0].mxu0
        %2116 = vmatprep.mubr.f32.mxu0 0.0
        %2117 = vmatmul.mubr.f32.gmra.mrb[0].mxu0 %v2023
        %v2118 = vpop.f32.mrb[0].mxu0
        %v2119 = vadd.f32 0.0, %v2118
        %v2120 = vpop.f32.mrb[0].mxu0
        %2121 = vmatprep.mubr.f32.mxu0 0.0
        %2122 = vmatmul.mubr.f32.gmra.mrb[0].mxu0 %v2026
        %v2123 = vpop.f32.mrb[0].mxu0
        %v2124 = vadd.f32 0.0, %v2123
        %v2125 = vpop.f32.mrb[0].mxu0
        %2126 = vmatprep.mubr.f32.mxu0 0.0
        %2127 = vmatmul.mubr.f32.gmra.mrb[0].mxu0 %v2029
        %v2128 = vpop.f32.mrb[0].mxu0
        %v2129 = vadd.f32 0.0, %v2128
        %v2130 = vpop.f32.mrb[0].mxu0
        %2131 = vmatprep.mubr.f32.mxu0 0.0
        %2132 = vmatmul.mubr.f32.gmra.mrb[0].mxu0 %v2032
        %v2133 = vpop.f32.mrb[0].mxu0
        %v2134 = vadd.f32 0.0, %v2133
        %v2135 = vpop.f32.mrb[0].mxu0
        %2136 = vmatprep.mubr.f32.mxu0 0.0
        %2137 = vmatmul.mubr.f32.gmra.mrb[0].mxu0 %v2035
        %v2138 = vpop.f32.mrb[0].mxu0
        %v2139 = vadd.f32 0.0, %v2138
        %v2140 = vpop.f32.mrb[0].mxu0
        %2141 = vdwg.mxu0
        %v2142 = vsel %vm702, %v1974, 0.0
        %2143 = vadd.xlane.f32.xlu0 %v2142
        %v2144 = vpop.xlane.xlu0 %2143
        %v2145 = vsel %vm702, %v1976, 0.0
        %2146 = vadd.xlane.f32.xlu0 %v2145
        %v2147 = vpop.xlane.xlu0 %2146
        %v2148 = vsel %vm702, %v1978, 0.0
        %2149 = vadd.xlane.f32.xlu0 %v2148
        %v2150 = vpop.xlane.xlu0 %2149
        %v2151 = vsel %vm702, %v1980, 0.0
        %2152 = vadd.xlane.f32.xlu0 %v2151
        %v2153 = vpop.xlane.xlu0 %2152
        %v2154 = vsel %vm702, %v1982, 0.0
        %2155 = vadd.xlane.f32.xlu0 %v2154
        %v2156 = vpop.xlane.xlu0 %2155
        %v2157 = vsel %vm702, %v1984, 0.0
        %2158 = vadd.xlane.f32.xlu0 %v2157
        %v2159 = vpop.xlane.xlu0 %2158
        %v2160 = vsel %vm702, %v1986, 0.0
        %2161 = vadd.xlane.f32.xlu0 %v2160
        %v2162 = vpop.xlane.xlu0 %2161
        %v2163 = vsel %vm702, %v1988, 0.0
        %2164 = vadd.xlane.f32.xlu0 %v2163
        %v2165 = vpop.xlane.xlu0 %2164
        %v2166 = vrcp.pop %v2144
        %v2167 = vrcp.pop %v2147
        %v2168 = vrcp.pop %v2150
        %v2169 = vrcp.pop %v2153
        %v2170 = vrcp.pop %v2156
        %v2171 = vrcp.pop %v2159
        %v2172 = vrcp.pop %v2162
        %v2173 = vrcp.pop %v2165
        %v2174 = vmul.f32 %v2104, %v2166
        %v2175 = vmul.f32 %v2109, %v2167
        %v2176 = vmul.f32 %v2114, %v2168
        %v2177 = vmul.f32 %v2119, %v2169
        %v2178 = vmul.f32 %v2124, %v2170
        %v2179 = vmul.f32 %v2129, %v2171
        %v2180 = vmul.f32 %v2134, %v2172
        %v2181 = vmul.f32 %v2139, %v2173
        %2190 = vrot.lane.b32.xlu0 %v1338, 32
        %v2191 = vpop.permute.xlu0 %2190
        %2192 = vrot.lane.b32.xlu0 %v1339, 32
        %v2193 = vpop.permute.xlu0 %2192
        %2194 = vrot.lane.b32.xlu0 %v1340, 32
        %v2195 = vpop.permute.xlu0 %2194
        %2196 = vrot.lane.b32.xlu0 %v1341, 32
        %v2197 = vpop.permute.xlu0 %2196
        %2198 = vrot.lane.b32.xlu0 %v1342, 32
        %v2199 = vpop.permute.xlu0 %2198
        %2200 = vrot.lane.b32.xlu0 %v1343, 32
        %v2201 = vpop.permute.xlu0 %2200
        %2202 = vrot.lane.b32.xlu0 %v1344, 32
        %v2203 = vpop.permute.xlu0 %2202
        %2204 = vrot.lane.b32.xlu0 %v1345, 32
        %v2205 = vpop.permute.xlu0 %2204
        %2222 = vrot.lane.b32.xlu0 %v1756, 64
        %v2223 = vpop.permute.xlu0 %2222
        %2224 = vrot.lane.b32.xlu0 %v1757, 64
        %v2225 = vpop.permute.xlu0 %2224
        %2226 = vrot.lane.b32.xlu0 %v1758, 64
        %v2227 = vpop.permute.xlu0 %2226
        %2228 = vrot.lane.b32.xlu0 %v1759, 64
        %v2229 = vpop.permute.xlu0 %2228
        %2230 = vrot.lane.b32.xlu0 %v1760, 64
        %v2231 = vpop.permute.xlu0 %2230
        %2232 = vrot.lane.b32.xlu0 %v1761, 64
        %v2233 = vpop.permute.xlu0 %2232
        %2234 = vrot.lane.b32.xlu0 %v1762, 64
        %v2235 = vpop.permute.xlu0 %2234
        %2236 = vrot.lane.b32.xlu0 %v1763, 64
        %v2237 = vpop.permute.xlu0 %2236
        %2254 = vrot.lane.b32.xlu0 %v2174, 96
        %v2255 = vpop.permute.xlu0 %2254
        %2256 = vrot.lane.b32.xlu0 %v2175, 96
        %v2257 = vpop.permute.xlu0 %2256
        %2258 = vrot.lane.b32.xlu0 %v2176, 96
        %v2259 = vpop.permute.xlu0 %2258
        %2260 = vrot.lane.b32.xlu0 %v2177, 96
        %v2261 = vpop.permute.xlu0 %2260
        %2262 = vrot.lane.b32.xlu0 %v2178, 96
        %v2263 = vpop.permute.xlu0 %2262
        %2264 = vrot.lane.b32.xlu0 %v2179, 96
        %v2265 = vpop.permute.xlu0 %2264
        %2266 = vrot.lane.b32.xlu0 %v2180, 96
        %v2267 = vpop.permute.xlu0 %2266
        %2268 = vrot.lane.b32.xlu0 %v2181, 96
        %v2269 = vpop.permute.xlu0 %2268
        %v2278 = vsel %vm540, %v912, %v2191
        %v2279 = vsel %vm540, %v913, %v2193
        %v2280 = vsel %vm540, %v914, %v2195
        %v2281 = vsel %vm540, %v915, %v2197
        %v2282 = vsel %vm540, %v916, %v2199
        %v2283 = vsel %vm540, %v917, %v2201
        %v2284 = vsel %vm540, %v918, %v2203
        %v2285 = vsel %vm540, %v919, %v2205
        %v2286 = vsel %vm702, %v2278, %v2223
        %v2287 = vsel %vm702, %v2279, %v2225
        %v2288 = vsel %vm702, %v2280, %v2227
        %v2289 = vsel %vm702, %v2281, %v2229
        %v2290 = vsel %vm702, %v2282, %v2231
        %v2291 = vsel %vm702, %v2283, %v2233
        %v2292 = vsel %vm702, %v2284, %v2235
        %v2293 = vsel %vm702, %v2285, %v2237
        %vm2294 = vcmask 785408
        %v2295 = vsel %vm2294, %v2286, %v2255
        %v2296 = vsel %vm2294, %v2287, %v2257
        %v2297 = vsel %vm2294, %v2288, %v2259
        %v2298 = vsel %vm2294, %v2289, %v2261
        %v2299 = vsel %vm2294, %v2290, %v2263
        %v2300 = vsel %vm2294, %v2291, %v2265
        %v2301 = vsel %vm2294, %v2292, %v2267
        %v2302 = vsel %vm2294, %v2293, %v2269
        %v2303 = vld [vmem:[#allocation7] sm:$0xff]
        %v2304 = vld [vmem:[#allocation7 + $0x8] sm:$0xff]
        %v2305 = vld [vmem:[#allocation7 + $0x10] sm:$0xff]
        %v2306 = vld [vmem:[#allocation7 + $0x18] sm:$0xff]
        %v2307 = vld [vmem:[#allocation7 + $0x20] sm:$0xff]
        %v2308 = vld [vmem:[#allocation7 + $0x28] sm:$0xff]
        %v2309 = vld [vmem:[#allocation7 + $0x30] sm:$0xff]
        %v2310 = vld [vmem:[#allocation7 + $0x38] sm:$0xff]
        %v2311 = vld [vmem:[#allocation7 + $0x40] sm:$0xff]
        %v2312 = vld [vmem:[#allocation7 + $0x48] sm:$0xff]
        %v2313 = vld [vmem:[#allocation7 + $0x50] sm:$0xff]
        %v2314 = vld [vmem:[#allocation7 + $0x58] sm:$0xff]
        %v2315 = vld [vmem:[#allocation7 + $0x60] sm:$0xff]
        %v2316 = vld [vmem:[#allocation7 + $0x68] sm:$0xff]
        %v2317 = vld [vmem:[#allocation7 + $0x70] sm:$0xff]
        %v2318 = vld [vmem:[#allocation7 + $0x78] sm:$0xff]
        %v2319 = vld [vmem:[%s3] sm:$0x1]
        %v2321 = vlaneseq
        %v2322 = vshrl.u32 %v2321, 7
        %v2323 = vsub.s32 0, %v2322
        %v2324 = vrot.slane %v2319, %v2323
        %2326 = vmatprep.subr.mxu0 0.0
        %2327 = vmatpush1.msra.mxu0 %v2303
        %2328 = vmatprep.subr.mxu0 0.0
        %2329 = vmatpush1.msra.mxu0 %v2304
        %2330 = vmatprep.subr.mxu0 0.0
        %2331 = vmatpush1.msra.mxu0 %v2305
        %2332 = vmatprep.subr.mxu0 0.0
        %2333 = vmatpush1.msra.mxu0 %v2306
        %2334 = vmatprep.subr.mxu0 0.0
        %2335 = vmatpush1.msra.mxu0 %v2307
        %2336 = vmatprep.subr.mxu0 0.0
        %2337 = vmatpush1.msra.mxu0 %v2308
        %2338 = vmatprep.subr.mxu0 0.0
        %2339 = vmatpush1.msra.mxu0 %v2309
        %2340 = vmatprep.subr.mxu0 0.0
        %2341 = vmatpush1.msra.mxu0 %v2310
        %2342 = vmatprep.subr.mxu0 0.0
        %2343 = vmatpush1.msra.mxu0 %v2311
        %2344 = vmatprep.subr.mxu0 0.0
        %2345 = vmatpush1.msra.mxu0 %v2312
        %2346 = vmatprep.subr.mxu0 0.0
        %2347 = vmatpush1.msra.mxu0 %v2313
        %2348 = vmatprep.subr.mxu0 0.0
        %2349 = vmatpush1.msra.mxu0 %v2314
        %2350 = vmatprep.subr.mxu0 0.0
        %2351 = vmatpush1.msra.mxu0 %v2315
        %2352 = vmatprep.subr.mxu0 0.0
        %2353 = vmatpush1.msra.mxu0 %v2316
        %2354 = vmatprep.subr.mxu0 0.0
        %2355 = vmatpush1.msra.mxu0 %v2317
        %2356 = vmatprep.subr.mxu0 0.0
        %2357 = vmatpush1.msra.mxu0 %v2318
        %2358 = vmatprep.subr.mxu0 0.0
        %2359 = vmatpush1.msra.mxu0 0.0
        %2360 = vmatprep.subr.mxu0 0.0
        %2361 = vmatpush1.msra.mxu0 0.0
        %2362 = vmatprep.subr.mxu0 0.0
        %2363 = vmatpush1.msra.mxu0 0.0
        %2364 = vmatprep.subr.mxu0 0.0
        %2365 = vmatpush1.msra.mxu0 0.0
        %2366 = vmatprep.subr.mxu0 0.0
        %2367 = vmatpush1.msra.mxu0 0.0
        %2368 = vmatprep.subr.mxu0 0.0
        %2369 = vmatpush1.msra.mxu0 0.0
        %2370 = vmatprep.subr.mxu0 0.0
        %2371 = vmatpush1.msra.mxu0 0.0
        %2372 = vmatprep.subr.mxu0 0.0
        %2373 = vmatpush1.msra.mxu0 0.0
        %2374 = vmatprep.subr.mxu0 0.0
        %2375 = vmatpush1.msra.mxu0 0.0
        %2376 = vmatprep.subr.mxu0 0.0
        %2377 = vmatpush1.msra.mxu0 0.0
        %2378 = vmatprep.subr.mxu0 0.0
        %2379 = vmatpush1.msra.mxu0 0.0
        %2380 = vmatprep.subr.mxu0 0.0
        %2381 = vmatpush1.msra.mxu0 0.0
        %2382 = vmatprep.subr.mxu0 0.0
        %2383 = vmatpush1.msra.mxu0 0.0
        %2384 = vmatprep.subr.mxu0 0.0
        %2385 = vmatpush1.msra.mxu0 0.0
        %2386 = vmatprep.subr.mxu0 0.0
        %2387 = vmatpush1.msra.mxu0 0.0
        %2388 = vmatprep.subr.mxu0 0.0
        %2389 = vmatpush1.msra.mxu0 0.0
        %2390 = vmatprep.mubr.f32.mxu0 0.0
        %2391 = vmatmul.mubr.f32.gmra.mrb[0].mxu0 %v2295
        %v2392 = vpop.f32.mrb[0].mxu0
        %v2393 = vadd.f32 %v2324, %v2392
        %v2394 = vpop.f32.mrb[0].mxu0
        %2395 = vmatprep.mubr.f32.mxu0 0.0
        %2396 = vmatmul.mubr.f32.gmra.mrb[0].mxu0 %v2296
        %v2397 = vpop.f32.mrb[0].mxu0
        %v2398 = vadd.f32 %v2324, %v2397
        %v2399 = vpop.f32.mrb[0].mxu0
        %2400 = vmatprep.mubr.f32.mxu0 0.0
        %2401 = vmatmul.mubr.f32.gmra.mrb[0].mxu0 %v2297
        %v2402 = vpop.f32.mrb[0].mxu0
        %v2403 = vadd.f32 %v2324, %v2402
        %v2404 = vpop.f32.mrb[0].mxu0
        %2405 = vmatprep.mubr.f32.mxu0 0.0
        %2406 = vmatmul.mubr.f32.gmra.mrb[0].mxu0 %v2298
        %v2407 = vpop.f32.mrb[0].mxu0
        %v2408 = vadd.f32 %v2324, %v2407
        %v2409 = vpop.f32.mrb[0].mxu0
        %2410 = vmatprep.mubr.f32.mxu0 0.0
        %2411 = vmatmul.mubr.f32.gmra.mrb[0].mxu0 %v2299
        %v2412 = vpop.f32.mrb[0].mxu0
        %v2413 = vadd.f32 %v2324, %v2412
        %v2414 = vpop.f32.mrb[0].mxu0
        %2415 = vmatprep.mubr.f32.mxu0 0.0
        %2416 = vmatmul.mubr.f32.gmra.mrb[0].mxu0 %v2300
        %v2417 = vpop.f32.mrb[0].mxu0
        %v2418 = vadd.f32 %v2324, %v2417
        %v2419 = vpop.f32.mrb[0].mxu0
        %2420 = vmatprep.mubr.f32.mxu0 0.0
        %2421 = vmatmul.mubr.f32.gmra.mrb[0].mxu0 %v2301
        %v2422 = vpop.f32.mrb[0].mxu0
        %v2423 = vadd.f32 %v2324, %v2422
        %v2424 = vpop.f32.mrb[0].mxu0
        %2425 = vmatprep.mubr.f32.mxu0 0.0
        %2426 = vmatmul.mubr.f32.gmra.mrb[0].mxu0 %v2302
        %v2427 = vpop.f32.mrb[0].mxu0
        %v2428 = vadd.f32 %v2324, %v2427
        %v2429 = vpop.f32.mrb[0].mxu0
        %2430 = vdwg.mxu0
        %2431 = vst [vmem:[%s244] sm:$0xff] %v2393
        %2432 = vst [vmem:[%s244 + $0x8] sm:$0xff] %v2398
        %2433 = vst [vmem:[%s244 + $0x10] sm:$0xff] %v2403
        %2434 = vst [vmem:[%s244 + $0x18] sm:$0xff] %v2408
        %2435 = vst [vmem:[%s244 + $0x20] sm:$0xff] %v2413
        %2436 = vst [vmem:[%s244 + $0x28] sm:$0xff] %v2418
        %2437 = vst [vmem:[%s244 + $0x30] sm:$0xff] %v2423
        %2438 = vst [vmem:[%s244 + $0x38] sm:$0xff] %v2428
        %s2439 = sand.u32 %s119, 1
        %s2440 = scalar_lea.sflag [#allocation4], %s2439
        %s2441 = sand.u32 %s119, 1
        %s2442 = smul.addr %s2441, 64
        %s2443 = scalar_lea.vmem [#allocation8], %s2442
        // Predicated region
        $region49: #{tpu_custom_call.1} parent=35 // pred_check
          %p2444 = pneg %p129
        $region50: #{tpu_custom_call.1} parent=35 // pred_check_branch
          %2446 = sbr.rel (%p2444) target = $region52
        $region51: #{tpu_custom_call.1} parent=35 // pred_region
          %s2447 = smul.u32 8, %s22
          %s2449 = ssub.s32 1024, 1024
          %2450 = vsyncadd %s2440, %s2449
          %s2451 = smul.addr %s2447, 128
          %s2452 = scalar_lea.hbm %s4, %s2451
          %s2453 = sshll.u32 %s2443, 4
          %s2454 = int_to_ptr.vmem [resolvable:$true] %s2453
          %2459 = dma.vmem_to_hbm [thread:$0]  %s2454, 1024, %s2452, %s2440, 128, 128, 8
        $region52: #{tpu_custom_call.1} parent=35 // pred_fallthru
          _
      $region36: #{tpu_custom_call.1} parent=5 // pred_fallthru
        _
      %p2460 = scmp.le.s32.totalorder 2, %s17
      // Predicated region
      $region53: #{tpu_custom_call.1} parent=5 // pred_check
        %p2461 = pneg %p2460
      $region54: #{tpu_custom_call.1} parent=5 // pred_check_branch
        %2463 = sbr.rel (%p2461) target = $region56
      $region55: #{tpu_custom_call.1} parent=5 // pred_region
        %s2464 = ssub.s32 %s17, 2
        // Predicated region
        $region57: #{tpu_custom_call.1} parent=55 // pred_check
          %p2465 = pneg %p135
        $region58: #{tpu_custom_call.1} parent=55 // pred_check_branch
          %2467 = sbr.rel (%p2465) target = $region60
        $region59: #{tpu_custom_call.1} parent=55 // pred_region
          %s2468 = sand.u32 %s120, 1
          %s2469 = scalar_lea.sflag [#allocation4], %s2468
          %s2470 = sand.u32 %s120, 1
          %s2471 = smul.addr %s2470, 64
          %s2472 = scalar_lea.vmem [#allocation8], %s2471
          %2473 = dma.done %s2469, 1024
        $region60: #{tpu_custom_call.1} parent=55 // pred_fallthru
          _
      $region56: #{tpu_custom_call.1} parent=5 // pred_fallthru
        _
    $region6: #{tpu_custom_call.1} parent=1 // loop_footer
      %s21 = sadd.s32 1, %s17
    $region7: #{tpu_custom_call.1} parent=1 // loop_footer_branch
      %16 = sbr.rel target = $region3
    $region8: #{tpu_custom_call.1} parent=1 // loop_exit
      _
    %2474 = vsyncpa [#allocation3], 1
    %s2475 = scalar_lea.sflag [#allocation3], 1
    %2476 = vsyncpa %s2475, 1
    %2477 = vsyncpa [#allocation6], 1
    %2478 = vsyncpa [#allocation4], 1
    %s2479 = scalar_lea.sflag [#allocation4], 1
    %2480 = vsyncpa %s2479, 1

</llo_original>
